<compile_context>
chip_gen: v5e
topology: v5e:2x2
jax: 0.10.0
libtpu: 0.0.40
codegen_flags: <defaults>
</compile_context>

<pallas_src>
import jax
import jax.numpy as jnp
import numpy as np
from jax.experimental import pallas as pl
from jax.experimental.pallas import tpu as pltpu


def caption_attention_kernel(
    cf_ref, dh_ref, word_ref, maskb_ref,
    wf_ref, bf_ref,            # cap_features_att : (C, A), (1, A)
    wfull_ref,                 # cap_full_att weight row : (1, A) (bias dropped)
    w_word_ref,                # packed [wg_w | wtc_w]        : (C, 2C)
    w_dh_ref, b_dh_ref,        # packed [wg_h | wtc_h | wd]   : (D, 2C+A), (1, 2C+A)
    w_ctx_ref, b_ctx_ref,      # packed [wg_c | wsc]          : (C, 2C),   (1, 2C)
    out_ref,                   # fused [gated_context | alpha]: (TB, C+L)
):
    cf = cf_ref[...]                             # (TB, L, C), mxu dtype
    TB, L, C = cf.shape
    A = wf_ref.shape[1]
    mxu_dtype = wf_ref.dtype

    dh = dh_ref[...].astype(mxu_dtype)           # (TB, D)
    word = word_ref[...].astype(mxu_dtype)       # (TB, C)

    # ---- packed shared-LHS matmuls (3 MXU issues instead of 7) -----------
    # hidden path packed as [wg_h | wtc_h | wd] so the C-wide zt / tc chunks
    # line up at lane offsets 0 and C with the word / ctx packed outputs.
    dh_out = jnp.dot(dh, w_dh_ref[...],
                     preferred_element_type=jnp.float32) + b_dh_ref[...]
    dh_zt = dh_out[:, :C]                        # dh @ wg_h  + bg   (TB, C)
    dh_tc = dh_out[:, C:2 * C]                   # dh @ wtc_h + btc  (TB, C)
    att2 = dh_out[:, 2 * C:]                     # dh @ wd    + bd   (TB, A)

    word_out = jnp.dot(word, w_word_ref[...], preferred_element_type=jnp.float32)
    word_zt = word_out[:, :C]                    # word @ wg_w       (TB, C)
    word_tc = word_out[:, C:]                    # word @ wtc_w      (TB, C)

    # ---- attention scores -------------------------------------------------
    # (TB, L, C) -> (TB*L, C): sublane-layout no-op for f32 since L % 8 == 0.
    att1 = jnp.dot(cf.reshape(TB * L, C), wf_ref[...],
                   preferred_element_type=jnp.float32) + bf_ref[...]
    h = jnp.tanh(att1.reshape(TB, L, A) + att2[:, None, :])          # (TB, L, A)

    # cap_full_att (Linear(A, 1)) as a lane reduction; its scalar bias is
    # dropped (softmax is shift-invariant, so it never affects the outputs).
    att = jnp.sum(h * wfull_ref[...][None, :, :], axis=-1)           # (TB, L)
    att = att + maskb_ref[...]                   # additive mask bias (0 / -1e10)

    # stable softmax over L
    m = jnp.max(att, axis=1, keepdims=True)
    e = jnp.exp(att - m)
    alpha = e / jnp.sum(e, axis=1, keepdims=True)                    # (TB, L)

    # ---- context: VPU multiply + sublane reduce (L is small) --------------
    context = jnp.sum(cf * alpha[:, :, None], axis=1)                # (TB, C) f32

    ctx_out = jnp.dot(context.astype(mxu_dtype), w_ctx_ref[...],
                      preferred_element_type=jnp.float32) + b_ctx_ref[...]
    ctx_zt = ctx_out[:, :C]                      # context @ wg_c
    sc_pre = ctx_out[:, C:]                      # context @ wsc + bsc

    zt = jax.nn.sigmoid(word_zt + dh_zt + ctx_zt)
    sc = jnp.tanh(sc_pre)
    tc = jnp.tanh(word_tc + dh_tc)
    gated = zt * sc + (1.0 - zt) * tc            # (TB, C)

    # fused lane-dense output slab: [gated_context | alpha]
    out_ref[:, :C] = gated.astype(out_ref.dtype)
    out_ref[:, C:] = alpha.astype(out_ref.dtype)


def caption_attention_c(caption_features, decoder_hidden, word, prev_caption_mask,
                        params, *, batch_tile=None, mxu_dtype=jnp.float32):
    B, L, C = caption_features.shape
    D = decoder_hidden.shape[1]
    A = params["wf"].shape[1]

    # Fat batch tile: fill the MXU M dimension; at small B run one grid step.
    # On v7x pass an explicit batch_tile so nb is a multiple of 2 (megacore).
    if batch_tile is None:
        batch_tile = min(B, 128)
    TB = batch_tile
    assert B % TB == 0, "pad batch to a multiple of the batch tile"
    nb = B // TB
    if nb > 1:
        assert TB % 8 == 0, "batch tile must be a multiple of 8 when tiling"

    f32 = jnp.float32

    # ---- host-side one-time packing (amortized over decode steps) ---------
    w_word = jnp.concatenate([params["wg_w"], params["wtc_w"]], axis=1).astype(mxu_dtype)
    w_dh = jnp.concatenate([params["wg_h"], params["wtc_h"], params["wd"]],
                           axis=1).astype(mxu_dtype)                          # (D, 2C+A)
    b_dh = jnp.concatenate([params["bg"], params["btc"], params["bd"]],
                           axis=1).astype(f32)                                # (1, 2C+A)
    w_ctx = jnp.concatenate([params["wg_c"], params["wsc"]], axis=1).astype(mxu_dtype)
    b_ctx = jnp.concatenate([jnp.zeros_like(params["bsc"]), params["bsc"]],
                            axis=1).astype(f32)                               # (1, 2C)
    wf = params["wf"].astype(mxu_dtype)
    bf = params["bf"].astype(f32)
    wfull = params["wfull"].astype(f32)
    # params["bfull"] intentionally unused: softmax(x + b) == softmax(x).

    # Mask folded into an additive bias (replaces compare+select in the kernel).
    mask_bias = jnp.where(prev_caption_mask == 0.0,
                          jnp.float32(-1e10), jnp.float32(0.0)).astype(f32)

    cf = caption_features.astype(mxu_dtype)   # the only operand scaling with B*L*C
    dh = decoder_hidden.astype(f32)
    wd_in = word.astype(f32)

    def rep(shape):  # resident weight block: full array, constant index map
        nd = len(shape)
        return pl.BlockSpec(shape, lambda b, _nd=nd: (0,) * _nd)

    in_specs = [
        pl.BlockSpec((TB, L, C), lambda b: (b, 0, 0)),     # caption_features
        pl.BlockSpec((TB, D), lambda b: (b, 0)),           # decoder_hidden
        pl.BlockSpec((TB, C), lambda b: (b, 0)),           # word
        pl.BlockSpec((TB, L), lambda b: (b, 0)),           # mask bias
        rep((C, A)),                                       # wf
        rep((1, A)),                                       # bf
        rep((1, A)),                                       # wfull
        rep((C, 2 * C)),                                   # w_word packed
        rep((D, 2 * C + A)),                               # w_dh packed
        rep((1, 2 * C + A)),                               # b_dh packed
        rep((C, 2 * C)),                                   # w_ctx packed
        rep((1, 2 * C)),                                   # b_ctx packed
    ]
    out_specs = pl.BlockSpec((TB, C + L), lambda b: (b, 0))
    out_shape = jax.ShapeDtypeStruct((B, C + L), f32)

    # ---- explicit VMEM budget (safe against v7x's 64 MiB physical VMEM) ---
    def _nbytes(x):
        return int(np.prod(x.shape)) * jnp.dtype(x.dtype).itemsize

    mxu_isz = jnp.dtype(mxu_dtype).itemsize
    step_bytes = (TB * L * C * mxu_isz          # cf tile
                  + TB * D * 4 + TB * C * 4     # dh, word
                  + TB * L * 4                  # mask bias
                  + TB * (C + L) * 4)           # fused output slab
    weight_bytes = sum(map(_nbytes, (wf, bf, wfull, w_word, w_dh, b_dh,
                                     w_ctx, b_ctx)))
    vmem_est = 2 * (step_bytes + weight_bytes)  # everything double-buffered
    vmem_limit = int(min(48 << 20, max(16 << 20, 2 * vmem_est)))

    out = pl.pallas_call(
        caption_attention_kernel,
        out_shape=out_shape,
        grid=(nb,),
        in_specs=in_specs,
        out_specs=out_specs,
        compiler_params=pltpu.CompilerParams(
            dimension_semantics=("parallel",),   # lets v7x split batch tiles
            vmem_limit_bytes=vmem_limit),
    )(cf, dh, wd_in, mask_bias,
      wf, bf, wfull, w_word, w_dh, b_dh, w_ctx, b_ctx)

    # split the fused slab back into the module's two outputs
    return out[:, :C], out[:, C:]


def _reference(caption_features, decoder_hidden, word, mask, p):
    # pure-JAX reference mirroring the PyTorch forward (unpacked weights)
    att1 = caption_features @ p["wf"] + p["bf"]
    att2 = decoder_hidden @ p["wd"] + p["bd"]
    h = jnp.tanh(att1 + att2[:, None, :])
    att = jnp.sum(h * p["wfull"][None, :, :], axis=-1) + p["bfull"][0, 0]
    att = jnp.where(mask == 0.0, -1e10, att)
    alpha = jax.nn.softmax(att, axis=1)
    context = jnp.sum(caption_features * alpha[:, :, None], axis=1)
    zt = jax.nn.sigmoid(word @ p["wg_w"] + decoder_hidden @ p["wg_h"]
                        + context @ p["wg_c"] + p["bg"])
    sc = jnp.tanh(context @ p["wsc"] + p["bsc"])
    tc = jnp.tanh(word @ p["wtc_w"] + decoder_hidden @ p["wtc_h"] + p["btc"])
    return zt * sc + (1.0 - zt) * tc, alpha


if __name__ == "__main__":
    # caption_features_dim = decoder_dim = 32 (required by tc_affine), attention_dim = 16
    B, L, C, D, A = 16, 8, 32, 32, 16

    key = jax.random.PRNGKey(0)
    ks = jax.random.split(key, 20)

    def w(k, shape, scale=0.1):
        return (scale * jax.random.normal(k, shape)).astype(jnp.float32)

    params = {
        "wf":    w(ks[0], (C, A)), "bf":    w(ks[1], (1, A)),
        "wd":    w(ks[2], (D, A)), "bd":    w(ks[3], (1, A)),
        "wfull": w(ks[4], (1, A)), "bfull": w(ks[5], (1, 1)),
        # context_gate: Linear(2C + D, C) split into [word | hidden | context]
        "wg_w":  w(ks[6], (C, C)), "wg_h":  w(ks[7], (D, C)),
        "wg_c":  w(ks[8], (C, C)), "bg":    w(ks[9], (1, C)),
        "wsc":   w(ks[10], (C, C)), "bsc":  w(ks[11], (1, C)),
        # tc_affine: Linear(2D, C) split into [word | hidden]
        "wtc_w": w(ks[12], (C, C)), "wtc_h": w(ks[13], (D, C)),
        "btc":   w(ks[14], (1, C)),
    }

    caption_features = w(ks[15], (B, L, C), scale=1.0)
    decoder_hidden = w(ks[16], (B, D), scale=1.0)
    word = w(ks[17], (B, C), scale=1.0)

    # mask: varying number of valid tokens per row (>= 1 valid everywhere)
    mask_np = np.zeros((B, L), dtype=np.float32)
    for b in range(B):
        valid = (b % L) + 1
        mask_np[b, :valid] = 1.0
    prev_caption_mask = jnp.asarray(mask_np)

    # Default: whole batch in one grid step (TB=16, TB*L=128 rows for att1).
    gated_context, alpha_c = caption_attention_c(
        caption_features, decoder_hidden, word, prev_caption_mask, params)
    gated_context = jax.block_until_ready(gated_context)
    alpha_c = jax.block_until_ready(alpha_c)

    ref_gc, ref_alpha = _reference(caption_features, decoder_hidden, word,
                                   prev_caption_mask, params)
    assert np.allclose(np.asarray(gated_context), np.asarray(ref_gc),
                       atol=1e-5, rtol=1e-5)
    assert np.allclose(np.asarray(alpha_c), np.asarray(ref_alpha),
                       atol=1e-5, rtol=1e-5)

    print("KERNEL_OK")
</pallas_src>

<mosaic_0001>
module attributes {stable_mosaic.version = 11 : i64} {
  func.func @caption_attention_kernel(%arg0: i32, %arg1: memref<16x8x32xf32, #tpu.memory_space<vmem>>, %arg2: memref<16x32xf32, #tpu.memory_space<vmem>>, %arg3: memref<16x32xf32, #tpu.memory_space<vmem>>, %arg4: memref<16x8xf32, #tpu.memory_space<vmem>>, %arg5: memref<32x16xf32, #tpu.memory_space<vmem>>, %arg6: memref<1x16xf32, #tpu.memory_space<vmem>>, %arg7: memref<1x16xf32, #tpu.memory_space<vmem>>, %arg8: memref<32x64xf32, #tpu.memory_space<vmem>>, %arg9: memref<32x80xf32, #tpu.memory_space<vmem>>, %arg10: memref<1x80xf32, #tpu.memory_space<vmem>>, %arg11: memref<32x64xf32, #tpu.memory_space<vmem>>, %arg12: memref<1x64xf32, #tpu.memory_space<vmem>>, %arg13: memref<16x40xf32, #tpu.memory_space<vmem>>) attributes {dimension_semantics = [#tpu.dimension_semantics<parallel>], iteration_bounds = array<i64: 1>, scalar_prefetch = 0 : i64, scratch_operands = 0 : i64, tpu.core_type = #tpu.core_type<tc>, window_params = [{transform_indices = @transform_0, window_bounds = array<i64: 16, 8, 32>}, {transform_indices = @transform_1, window_bounds = array<i64: 16, 32>}, {transform_indices = @transform_2, window_bounds = array<i64: 16, 32>}, {transform_indices = @transform_3, window_bounds = array<i64: 16, 8>}, {pipeline_mode = #tpu.pipeline_mode<synchronous>, transform_indices = @transform_4, window_bounds = array<i64: 32, 16>}, {pipeline_mode = #tpu.pipeline_mode<synchronous>, transform_indices = @transform_5, window_bounds = array<i64: 1, 16>}, {pipeline_mode = #tpu.pipeline_mode<synchronous>, transform_indices = @transform_6, window_bounds = array<i64: 1, 16>}, {pipeline_mode = #tpu.pipeline_mode<synchronous>, transform_indices = @transform_7, window_bounds = array<i64: 32, 64>}, {pipeline_mode = #tpu.pipeline_mode<synchronous>, transform_indices = @transform_8, window_bounds = array<i64: 32, 80>}, {pipeline_mode = #tpu.pipeline_mode<synchronous>, transform_indices = @transform_9, window_bounds = array<i64: 1, 80>}, {pipeline_mode = #tpu.pipeline_mode<synchronous>, transform_indices = @transform_10, window_bounds = array<i64: 32, 64>}, {pipeline_mode = #tpu.pipeline_mode<synchronous>, transform_indices = @transform_11, window_bounds = array<i64: 1, 64>}, {transform_indices = @transform_12, window_bounds = array<i64: 16, 40>}]} {
    %c0 = arith.constant 0 : index
    %c0_0 = arith.constant 0 : index
    %c0_1 = arith.constant 0 : index
    %0 = vector.load %arg1[%c0, %c0_0, %c0_1] : memref<16x8x32xf32, #tpu.memory_space<vmem>>, vector<16x8x32xf32>
    %c0_2 = arith.constant 0 : index
    %c0_3 = arith.constant 0 : index
    %1 = vector.load %arg2[%c0_2, %c0_3] : memref<16x32xf32, #tpu.memory_space<vmem>>, vector<16x32xf32>
    %c0_4 = arith.constant 0 : index
    %c0_5 = arith.constant 0 : index
    %2 = vector.load %arg3[%c0_4, %c0_5] : memref<16x32xf32, #tpu.memory_space<vmem>>, vector<16x32xf32>
    %c0_6 = arith.constant 0 : index
    %c0_7 = arith.constant 0 : index
    %3 = vector.load %arg9[%c0_6, %c0_7] : memref<32x80xf32, #tpu.memory_space<vmem>>, vector<32x80xf32>
    %cst = arith.constant dense<0.000000e+00> : vector<16x80xf32>
    %4 = tpu.matmul %1, %3, %cst {dimension_numbers = #tpu.dot_dimension_numbers<[1], [0], [0], [1], [0, 0, 1, 1], [], []>} : vector<16x32xf32>, vector<32x80xf32>, vector<16x80xf32> -> vector<16x80xf32>
    %c0_8 = arith.constant 0 : index
    %c0_9 = arith.constant 0 : index
    %5 = vector.load %arg10[%c0_8, %c0_9] : memref<1x80xf32, #tpu.memory_space<vmem>>, vector<1x80xf32>
    %6 = vector.broadcast %5 : vector<1x80xf32> to vector<16x80xf32>
    %7 = arith.addf %4, %6 : vector<16x80xf32>
    %8 = vector.extract_strided_slice %7 {offsets = [0, 0], sizes = [16, 32], strides = [1, 1]} : vector<16x80xf32> to vector<16x32xf32>
    %9 = vector.extract_strided_slice %7 {offsets = [0, 32], sizes = [16, 32], strides = [1, 1]} : vector<16x80xf32> to vector<16x32xf32>
    %10 = vector.extract_strided_slice %7 {offsets = [0, 64], sizes = [16, 16], strides = [1, 1]} : vector<16x80xf32> to vector<16x16xf32>
    %c0_10 = arith.constant 0 : index
    %c0_11 = arith.constant 0 : index
    %11 = vector.load %arg8[%c0_10, %c0_11] : memref<32x64xf32, #tpu.memory_space<vmem>>, vector<32x64xf32>
    %cst_12 = arith.constant dense<0.000000e+00> : vector<16x64xf32>
    %12 = tpu.matmul %2, %11, %cst_12 {dimension_numbers = #tpu.dot_dimension_numbers<[1], [0], [0], [1], [0, 0, 1, 1], [], []>} : vector<16x32xf32>, vector<32x64xf32>, vector<16x64xf32> -> vector<16x64xf32>
    %13 = vector.extract_strided_slice %12 {offsets = [0, 0], sizes = [16, 32], strides = [1, 1]} : vector<16x64xf32> to vector<16x32xf32>
    %14 = vector.extract_strided_slice %12 {offsets = [0, 32], sizes = [16, 32], strides = [1, 1]} : vector<16x64xf32> to vector<16x32xf32>
    %15 = vector.shape_cast %0 : vector<16x8x32xf32> to vector<128x32xf32>
    %c0_13 = arith.constant 0 : index
    %c0_14 = arith.constant 0 : index
    %16 = vector.load %arg5[%c0_13, %c0_14] : memref<32x16xf32, #tpu.memory_space<vmem>>, vector<32x16xf32>
    %cst_15 = arith.constant dense<0.000000e+00> : vector<128x16xf32>
    %17 = tpu.matmul %15, %16, %cst_15 {dimension_numbers = #tpu.dot_dimension_numbers<[1], [0], [0], [1], [0, 0, 1, 1], [], []>} : vector<128x32xf32>, vector<32x16xf32>, vector<128x16xf32> -> vector<128x16xf32>
    %c0_16 = arith.constant 0 : index
    %c0_17 = arith.constant 0 : index
    %18 = vector.load %arg6[%c0_16, %c0_17] : memref<1x16xf32, #tpu.memory_space<vmem>>, vector<1x16xf32>
    %19 = vector.broadcast %18 : vector<1x16xf32> to vector<128x16xf32>
    %20 = arith.addf %17, %19 : vector<128x16xf32>
    %21 = vector.shape_cast %20 : vector<128x16xf32> to vector<16x8x16xf32>
    %22 = vector.shape_cast %10 : vector<16x16xf32> to vector<16x1x16xf32>
    %23 = vector.broadcast %22 : vector<16x1x16xf32> to vector<16x8x16xf32>
    %24 = arith.addf %21, %23 : vector<16x8x16xf32>
    %25 = math.tanh %24 : vector<16x8x16xf32>
    %c0_18 = arith.constant 0 : index
    %c0_19 = arith.constant 0 : index
    %26 = vector.load %arg7[%c0_18, %c0_19] : memref<1x16xf32, #tpu.memory_space<vmem>>, vector<1x16xf32>
    %27 = vector.shape_cast %26 : vector<1x16xf32> to vector<1x1x16xf32>
    %28 = vector.broadcast %27 : vector<1x1x16xf32> to vector<16x8x16xf32>
    %29 = arith.mulf %25, %28 : vector<16x8x16xf32>
    %cst_20 = arith.constant dense<0.000000e+00> : vector<16x8xf32>
    %30 = vector.multi_reduction <add>, %29, %cst_20 [2] : vector<16x8x16xf32> to vector<16x8xf32>
    %c0_21 = arith.constant 0 : index
    %c0_22 = arith.constant 0 : index
    %31 = vector.load %arg4[%c0_21, %c0_22] : memref<16x8xf32, #tpu.memory_space<vmem>>, vector<16x8xf32>
    %32 = arith.addf %30, %31 : vector<16x8xf32>
    %cst_23 = arith.constant dense<0xFF800000> : vector<16xf32>
    %33 = vector.multi_reduction <maximumf>, %32, %cst_23 [1] : vector<16x8xf32> to vector<16xf32>
    %34 = vector.shape_cast %33 : vector<16xf32> to vector<16x1xf32>
    %35 = vector.broadcast %34 : vector<16x1xf32> to vector<16x8xf32>
    %36 = arith.subf %32, %35 : vector<16x8xf32>
    %37 = math.exp %36 : vector<16x8xf32>
    %cst_24 = arith.constant dense<0.000000e+00> : vector<16xf32>
    %38 = vector.multi_reduction <add>, %37, %cst_24 [1] : vector<16x8xf32> to vector<16xf32>
    %39 = vector.shape_cast %38 : vector<16xf32> to vector<16x1xf32>
    %40 = vector.broadcast %39 : vector<16x1xf32> to vector<16x8xf32>
    %41 = arith.divf %37, %40 : vector<16x8xf32>
    %42 = vector.shape_cast %41 : vector<16x8xf32> to vector<16x8x1xf32>
    %43 = vector.broadcast %42 : vector<16x8x1xf32> to vector<16x8x32xf32>
    %44 = arith.mulf %0, %43 : vector<16x8x32xf32>
    %cst_25 = arith.constant dense<0.000000e+00> : vector<16x32xf32>
    %45 = vector.multi_reduction <add>, %44, %cst_25 [1] : vector<16x8x32xf32> to vector<16x32xf32>
    %c0_26 = arith.constant 0 : index
    %c0_27 = arith.constant 0 : index
    %46 = vector.load %arg11[%c0_26, %c0_27] : memref<32x64xf32, #tpu.memory_space<vmem>>, vector<32x64xf32>
    %cst_28 = arith.constant dense<0.000000e+00> : vector<16x64xf32>
    %47 = tpu.matmul %45, %46, %cst_28 {dimension_numbers = #tpu.dot_dimension_numbers<[1], [0], [0], [1], [0, 0, 1, 1], [], []>} : vector<16x32xf32>, vector<32x64xf32>, vector<16x64xf32> -> vector<16x64xf32>
    %c0_29 = arith.constant 0 : index
    %c0_30 = arith.constant 0 : index
    %48 = vector.load %arg12[%c0_29, %c0_30] : memref<1x64xf32, #tpu.memory_space<vmem>>, vector<1x64xf32>
    %49 = vector.broadcast %48 : vector<1x64xf32> to vector<16x64xf32>
    %50 = arith.addf %47, %49 : vector<16x64xf32>
    %51 = vector.extract_strided_slice %50 {offsets = [0, 0], sizes = [16, 32], strides = [1, 1]} : vector<16x64xf32> to vector<16x32xf32>
    %52 = vector.extract_strided_slice %50 {offsets = [0, 32], sizes = [16, 32], strides = [1, 1]} : vector<16x64xf32> to vector<16x32xf32>
    %53 = arith.addf %13, %8 : vector<16x32xf32>
    %54 = arith.addf %53, %51 : vector<16x32xf32>
    %55 = arith.negf %54 : vector<16x32xf32>
    %56 = math.exp %55 : vector<16x32xf32>
    %cst_31 = arith.constant 1.000000e+00 : f32
    %57 = vector.broadcast %cst_31 : f32 to vector<16x32xf32>
    %58 = arith.addf %57, %56 : vector<16x32xf32>
    %59 = arith.divf %57, %58 : vector<16x32xf32>
    %60 = math.tanh %52 : vector<16x32xf32>
    %61 = arith.addf %14, %9 : vector<16x32xf32>
    %62 = math.tanh %61 : vector<16x32xf32>
    %63 = arith.mulf %59, %60 : vector<16x32xf32>
    %cst_32 = arith.constant 1.000000e+00 : f32
    %64 = vector.broadcast %cst_32 : f32 to vector<16x32xf32>
    %65 = arith.subf %64, %59 : vector<16x32xf32>
    %66 = arith.mulf %65, %62 : vector<16x32xf32>
    %67 = arith.addf %63, %66 : vector<16x32xf32>
    %c0_33 = arith.constant 0 : index
    %c0_34 = arith.constant 0 : index
    %68 = vector.load %arg13[%c0_33, %c0_34] : memref<16x40xf32, #tpu.memory_space<vmem>>, vector<16x32xf32>
    tpu.vector_store %arg13[%c0_33, %c0_34], %67 {strides = array<i32>} : memref<16x40xf32, #tpu.memory_space<vmem>>, vector<16x32xf32>,
    %c0_35 = arith.constant 0 : index
    %c32 = arith.constant 32 : index
    %69 = vector.load %arg13[%c0_35, %c32] : memref<16x40xf32, #tpu.memory_space<vmem>>, vector<16x8xf32>
    tpu.vector_store %arg13[%c0_35, %c32], %41 {strides = array<i32>} : memref<16x40xf32, #tpu.memory_space<vmem>>, vector<16x8xf32>,
    return
  }
  func.func @transform_0(%arg0: i32) -> (i32, i32, i32) {
    %c0_i32 = arith.constant 0 : i32
    %c0_i32_0 = arith.constant 0 : i32
    %c0_i32_1 = arith.constant 0 : i32
    return %arg0, %c0_i32, %c0_i32_0 : i32, i32, i32
  }
  func.func @transform_1(%arg0: i32) -> (i32, i32) {
    %c0_i32 = arith.constant 0 : i32
    %c0_i32_0 = arith.constant 0 : i32
    return %arg0, %c0_i32 : i32, i32
  }
  func.func @transform_2(%arg0: i32) -> (i32, i32) {
    %c0_i32 = arith.constant 0 : i32
    %c0_i32_0 = arith.constant 0 : i32
    return %arg0, %c0_i32 : i32, i32
  }
  func.func @transform_3(%arg0: i32) -> (i32, i32) {
    %c0_i32 = arith.constant 0 : i32
    %c0_i32_0 = arith.constant 0 : i32
    return %arg0, %c0_i32 : i32, i32
  }
  func.func @transform_4(%arg0: i32) -> (i32, i32) {
    %c0_i32 = arith.constant 0 : i32
    %c0_i32_0 = arith.constant 0 : i32
    %c0_i32_1 = arith.constant 0 : i32
    return %c0_i32, %c0_i32_0 : i32, i32
  }
  func.func @transform_5(%arg0: i32) -> (i32, i32) {
    %c0_i32 = arith.constant 0 : i32
    %c0_i32_0 = arith.constant 0 : i32
    %c0_i32_1 = arith.constant 0 : i32
    return %c0_i32, %c0_i32_0 : i32, i32
  }
  func.func @transform_6(%arg0: i32) -> (i32, i32) {
    %c0_i32 = arith.constant 0 : i32
    %c0_i32_0 = arith.constant 0 : i32
    %c0_i32_1 = arith.constant 0 : i32
    return %c0_i32, %c0_i32_0 : i32, i32
  }
  func.func @transform_7(%arg0: i32) -> (i32, i32) {
    %c0_i32 = arith.constant 0 : i32
    %c0_i32_0 = arith.constant 0 : i32
    %c0_i32_1 = arith.constant 0 : i32
    return %c0_i32, %c0_i32_0 : i32, i32
  }
  func.func @transform_8(%arg0: i32) -> (i32, i32) {
    %c0_i32 = arith.constant 0 : i32
    %c0_i32_0 = arith.constant 0 : i32
    %c0_i32_1 = arith.constant 0 : i32
    return %c0_i32, %c0_i32_0 : i32, i32
  }
  func.func @transform_9(%arg0: i32) -> (i32, i32) {
    %c0_i32 = arith.constant 0 : i32
    %c0_i32_0 = arith.constant 0 : i32
    %c0_i32_1 = arith.constant 0 : i32
    return %c0_i32, %c0_i32_0 : i32, i32
  }
  func.func @transform_10(%arg0: i32) -> (i32, i32) {
    %c0_i32 = arith.constant 0 : i32
    %c0_i32_0 = arith.constant 0 : i32
    %c0_i32_1 = arith.constant 0 : i32
    return %c0_i32, %c0_i32_0 : i32, i32
  }
  func.func @transform_11(%arg0: i32) -> (i32, i32) {
    %c0_i32 = arith.constant 0 : i32
    %c0_i32_0 = arith.constant 0 : i32
    %c0_i32_1 = arith.constant 0 : i32
    return %c0_i32, %c0_i32_0 : i32, i32
  }
  func.func @transform_12(%arg0: i32) -> (i32, i32) {
    %c0_i32 = arith.constant 0 : i32
    %c0_i32_0 = arith.constant 0 : i32
    return %arg0, %c0_i32 : i32, i32
  }
}

</mosaic_0001>

<llo_original>
// kernel: tpu_custom_call.1
$region0: #{tpu_custom_call.1}
  #allocation0 [shape = 'u32[]', space=smem, size = 0x4, offset = 0x4, fixed_abs, tag = 'smem constant byte address 0x4 - core index']
  #allocation1 [shape = 'u32[72,128]{1,0:T(1,128)}', space=vmem, size = 0x9000, scoped, tag = 'internal scratch']
  %s0 = inlined_call_operand.hbm [shape: f32[16,8,32], index: 0, kind: input, shape index: {}]
  %s1 = inlined_call_operand.vmem [shape: f32[16,32], index: 1, kind: input, shape index: {}]
  %s2 = inlined_call_operand.hbm [shape: f32[16,32], index: 2, kind: input, shape index: {}]
  %s3 = inlined_call_operand.vmem [shape: f32[16,8], index: 3, kind: input, shape index: {}]
  %s4 = inlined_call_operand.vmem [shape: f32[32,16], index: 4, kind: input, shape index: {}]
  %s5 = inlined_call_operand.vmem [shape: f32[1,16], index: 5, kind: input, shape index: {}]
  %s6 = inlined_call_operand.vmem [shape: f32[1,16], index: 6, kind: input, shape index: {}]
  %s7 = inlined_call_operand.vmem [shape: f32[32,64], index: 7, kind: input, shape index: {}]
  %s8 = inlined_call_operand.hbm [shape: f32[32,80], index: 8, kind: input, shape index: {}]
  %s9 = inlined_call_operand.vmem [shape: f32[1,80], index: 9, kind: input, shape index: {}]
  %s10 = inlined_call_operand.hbm [shape: f32[32,64], index: 10, kind: input, shape index: {}]
  %s11 = inlined_call_operand.vmem [shape: f32[1,64], index: 11, kind: input, shape index: {}]
  %s12 = inlined_call_operand.hbm [shape: f32[16,40], index: 12, kind: output, shape index: {}]
  %s13 = sld [smem:[#allocation0]]
  $region74: #{tpu_custom_call.1} parent=0
    _
  %s15 = ssub.s32 1, %s13
  %s16 = scalar_select 0, %s15, %s13
  $region1: #{tpu_custom_call.1} parent=0
    #allocation2 [shape = 'u8[65536]{0}', space=vmem, size = 0x10000, scoped, tag = 'input window, operand 0, single buffered']
    #allocation3 [shape = 's32[1]{0}', space=sflag, size = 0x4, scoped, tag = 'scoped memory for tpu_custom_call.1']
    #allocation4 [shape = 's32[1]{0}', space=sflag, size = 0x4, scoped, tag = 'scoped memory for tpu_custom_call.1']
    #allocation5 [shape = 'u8[8192]{0}', space=vmem, size = 0x2000, scoped, tag = 'input window, operand 2, single buffered']
    #allocation6 [shape = 's32[1]{0}', space=sflag, size = 0x4, scoped, tag = 'scoped memory for tpu_custom_call.1']
    #allocation7 [shape = 'u8[16384]{0}', space=vmem, size = 0x4000, scoped, tag = 'input window, operand 8, single buffered']
    #allocation8 [shape = 'u8[16384]{0}', space=vmem, size = 0x4000, scoped, tag = 'input window, operand 10, single buffered']
    #allocation9 [shape = 's32[1]{0}', space=sflag, size = 0x4, scoped, tag = 'scoped memory for tpu_custom_call.1']
    #allocation10 [shape = 'u8[8192]{0}', space=vmem, size = 0x2000, scoped, tag = 'output window, operand 0, single buffered']
    %17 = vsyncpa [#allocation3], 0
    %18 = vsyncpa [#allocation6], 0
    %19 = vsyncpa [#allocation9], 0
    %20 = vsyncpa [#allocation4], 0
    // Predicated region
    $region2: #{tpu_custom_call.1} parent=1 // pred_check
      _
    $region3: #{tpu_custom_call.1} parent=1 // pred_check_branch
      %22 = sbr.rel (0) target = $region5
    $region4: #{tpu_custom_call.1} parent=1 // pred_region
      %24 = vsyncadd [#allocation3], 0
      %s25 = sshll.u32 %s0, 4
      %s26 = int_to_ptr.hbm [resolvable:$true] %s25
      %s27 = sshll.u32 [#allocation2], 4
      %s28 = int_to_ptr.vmem [resolvable:$true] %s27
      %33 = dma.hbm_to_vmem [thread:$0]  %s26, 2048, %s28, [#allocation3], 128, 128, 8
    $region5: #{tpu_custom_call.1} parent=1 // pred_fallthru
      _
    // Predicated region
    $region6: #{tpu_custom_call.1} parent=1 // pred_check
      _
    $region7: #{tpu_custom_call.1} parent=1 // pred_check_branch
      %35 = sbr.rel (0) target = $region9
    $region8: #{tpu_custom_call.1} parent=1 // pred_region
      _
    $region9: #{tpu_custom_call.1} parent=1 // pred_fallthru
      _
    // Predicated region
    $region10: #{tpu_custom_call.1} parent=1 // pred_check
      _
    $region11: #{tpu_custom_call.1} parent=1 // pred_check_branch
      %37 = sbr.rel (0) target = $region13
    $region12: #{tpu_custom_call.1} parent=1 // pred_region
      %39 = vsyncadd [#allocation6], 0
      %s40 = sshll.u32 %s2, 4
      %s41 = int_to_ptr.hbm [resolvable:$true] %s40
      %s42 = sshll.u32 [#allocation5], 4
      %s43 = int_to_ptr.vmem [resolvable:$true] %s42
      %48 = dma.hbm_to_vmem [thread:$0]  %s41, 256, %s43, [#allocation6], 128, 128, 8
    $region13: #{tpu_custom_call.1} parent=1 // pred_fallthru
      _
    // Predicated region
    $region14: #{tpu_custom_call.1} parent=1 // pred_check
      _
    $region15: #{tpu_custom_call.1} parent=1 // pred_check_branch
      %50 = sbr.rel (0) target = $region17
    $region16: #{tpu_custom_call.1} parent=1 // pred_region
      _
    $region17: #{tpu_custom_call.1} parent=1 // pred_fallthru
      _
    // Predicated region
    $region18: #{tpu_custom_call.1} parent=1 // pred_check
      _
    $region19: #{tpu_custom_call.1} parent=1 // pred_check_branch
      %52 = sbr.rel (0) target = $region21
    $region20: #{tpu_custom_call.1} parent=1 // pred_region
      _
    $region21: #{tpu_custom_call.1} parent=1 // pred_fallthru
      _
    // Predicated region
    $region22: #{tpu_custom_call.1} parent=1 // pred_check
      _
    $region23: #{tpu_custom_call.1} parent=1 // pred_check_branch
      %54 = sbr.rel (0) target = $region25
    $region24: #{tpu_custom_call.1} parent=1 // pred_region
      _
    $region25: #{tpu_custom_call.1} parent=1 // pred_fallthru
      _
    // Predicated region
    $region26: #{tpu_custom_call.1} parent=1 // pred_check
      _
    $region27: #{tpu_custom_call.1} parent=1 // pred_check_branch
      %56 = sbr.rel (0) target = $region29
    $region28: #{tpu_custom_call.1} parent=1 // pred_region
      _
    $region29: #{tpu_custom_call.1} parent=1 // pred_fallthru
      _
    // Predicated region
    $region30: #{tpu_custom_call.1} parent=1 // pred_check
      _
    $region31: #{tpu_custom_call.1} parent=1 // pred_check_branch
      %58 = sbr.rel (0) target = $region33
    $region32: #{tpu_custom_call.1} parent=1 // pred_region
      _
    $region33: #{tpu_custom_call.1} parent=1 // pred_fallthru
      _
    // Predicated region
    $region34: #{tpu_custom_call.1} parent=1 // pred_check
      _
    $region35: #{tpu_custom_call.1} parent=1 // pred_check_branch
      %60 = sbr.rel (0) target = $region37
    $region36: #{tpu_custom_call.1} parent=1 // pred_region
      %62 = vsyncadd [#allocation6], 0
      %s63 = sshll.u32 %s8, 4
      %s64 = int_to_ptr.hbm [resolvable:$true] %s63
      %s65 = sshll.u32 [#allocation7], 4
      %s66 = int_to_ptr.vmem [resolvable:$true] %s65
      %71 = dma.hbm_to_vmem [thread:$0]  %s64, 512, %s66, [#allocation6], 128, 128, 8
    $region37: #{tpu_custom_call.1} parent=1 // pred_fallthru
      _
    // Predicated region
    $region38: #{tpu_custom_call.1} parent=1 // pred_check
      _
    $region39: #{tpu_custom_call.1} parent=1 // pred_check_branch
      %73 = sbr.rel (0) target = $region41
    $region40: #{tpu_custom_call.1} parent=1 // pred_region
      _
    $region41: #{tpu_custom_call.1} parent=1 // pred_fallthru
      _
    // Predicated region
    $region42: #{tpu_custom_call.1} parent=1 // pred_check
      _
    $region43: #{tpu_custom_call.1} parent=1 // pred_check_branch
      %75 = sbr.rel (0) target = $region45
    $region44: #{tpu_custom_call.1} parent=1 // pred_region
      %77 = vsyncadd [#allocation9], 0
      %s78 = sshll.u32 %s10, 4
      %s79 = int_to_ptr.hbm [resolvable:$true] %s78
      %s80 = sshll.u32 [#allocation8], 4
      %s81 = int_to_ptr.vmem [resolvable:$true] %s80
      %86 = dma.hbm_to_vmem [thread:$0]  %s79, 512, %s81, [#allocation9], 128, 128, 8
    $region45: #{tpu_custom_call.1} parent=1 // pred_fallthru
      _
    // Predicated region
    $region46: #{tpu_custom_call.1} parent=1 // pred_check
      _
    $region47: #{tpu_custom_call.1} parent=1 // pred_check_branch
      %88 = sbr.rel (0) target = $region49
    $region48: #{tpu_custom_call.1} parent=1 // pred_region
      _
    $region49: #{tpu_custom_call.1} parent=1 // pred_fallthru
      _
    // Predicated region
    $region50: #{tpu_custom_call.1} parent=1 // pred_check
      _
    $region51: #{tpu_custom_call.1} parent=1 // pred_check_branch
      %90 = sbr.rel (0) target = $region53
    $region52: #{tpu_custom_call.1} parent=1 // pred_region
      %92 = dma.done [#allocation3], 2048
    $region53: #{tpu_custom_call.1} parent=1 // pred_fallthru
      _
    // Predicated region
    $region54: #{tpu_custom_call.1} parent=1 // pred_check
      _
    $region55: #{tpu_custom_call.1} parent=1 // pred_check_branch
      %94 = sbr.rel (0) target = $region57
    $region56: #{tpu_custom_call.1} parent=1 // pred_region
      %96 = dma.done [#allocation6], 256
    $region57: #{tpu_custom_call.1} parent=1 // pred_fallthru
      _
    // Predicated region
    $region58: #{tpu_custom_call.1} parent=1 // pred_check
      _
    $region59: #{tpu_custom_call.1} parent=1 // pred_check_branch
      %98 = sbr.rel (0) target = $region61
    $region60: #{tpu_custom_call.1} parent=1 // pred_region
      %100 = dma.done [#allocation6], 512
    $region61: #{tpu_custom_call.1} parent=1 // pred_fallthru
      _
    // Predicated region
    $region62: #{tpu_custom_call.1} parent=1 // pred_check
      _
    $region63: #{tpu_custom_call.1} parent=1 // pred_check_branch
      %102 = sbr.rel (0) target = $region65
    $region64: #{tpu_custom_call.1} parent=1 // pred_region
      %104 = dma.done [#allocation9], 512
    $region65: #{tpu_custom_call.1} parent=1 // pred_fallthru
      _
    %v105 = vld [vmem:[#allocation2] sm:$0xff]
    %v106 = vld [vmem:[#allocation2 + $0x8] sm:$0xff]
    %v107 = vld [vmem:[#allocation2 + $0x10] sm:$0xff]
    %v108 = vld [vmem:[#allocation2 + $0x18] sm:$0xff]
    %v109 = vld [vmem:[#allocation2 + $0x20] sm:$0xff]
    %v110 = vld [vmem:[#allocation2 + $0x28] sm:$0xff]
    %v111 = vld [vmem:[#allocation2 + $0x30] sm:$0xff]
    %v112 = vld [vmem:[#allocation2 + $0x38] sm:$0xff]
    %v113 = vld [vmem:[#allocation2 + $0x40] sm:$0xff]
    %v114 = vld [vmem:[#allocation2 + $0x48] sm:$0xff]
    %v115 = vld [vmem:[#allocation2 + $0x50] sm:$0xff]
    %v116 = vld [vmem:[#allocation2 + $0x58] sm:$0xff]
    %v117 = vld [vmem:[#allocation2 + $0x60] sm:$0xff]
    %v118 = vld [vmem:[#allocation2 + $0x68] sm:$0xff]
    %v119 = vld [vmem:[#allocation2 + $0x70] sm:$0xff]
    %v120 = vld [vmem:[#allocation2 + $0x78] sm:$0xff]
    %v121 = vld [vmem:[%s1] sm:$0xff]
    %v122 = vld [vmem:[%s1 + $0x8] sm:$0xff]
    %v123 = vld [vmem:[#allocation5] sm:$0xff]
    %v124 = vld [vmem:[#allocation5 + $0x8] sm:$0xff]
    %v125 = vld [vmem:[#allocation7] sm:$0xff]
    %v126 = vld [vmem:[#allocation7 + $0x8] sm:$0xff]
    %v127 = vld [vmem:[#allocation7 + $0x10] sm:$0xff]
    %v128 = vld [vmem:[#allocation7 + $0x18] sm:$0xff]
    %v129 = vld [vmem:[%s9] sm:$0x1]
    %v131 = vperm.slane %v129, 0
    %vm133 = vcmask 261120
    %v135 = vsel %vm133, %v121, 0
    %v138 = vsel %vm133, %v122, 0
    %140 = vmatpush.msra.mxu0 0.0
    %141 = vmatpush.msra.mxu0 0.0
    %142 = vmatpush.msra.mxu0 0.0
    %143 = vmatpush.msra.mxu0 0.0
    %144 = vmatpush.msra.mxu0 0.0
    %145 = vmatpush.msra.mxu0 0.0
    %146 = vmatpush.msra.mxu0 0.0
    %147 = vmatpush.msra.mxu0 0.0
    %148 = vmatpush.msra.mxu0 0.0
    %149 = vmatpush.msra.mxu0 0.0
    %150 = vmatpush.msra.mxu0 0.0
    %151 = vmatpush.msra.mxu0 0.0
    %152 = vmatpush.msra.mxu0 %v128
    %153 = vmatpush.msra.mxu0 %v127
    %154 = vmatpush.msra.mxu0 %v126
    %155 = vmatpush.msra.mxu0 %v125
    %156 = vmatmul.f32.gmra.mxu0 %v135
    %v157 = vpop.f32.mrf.mxu0
    %v158 = vadd.f32 %v131, %v157
    %159 = vmatmul.f32.gmra.mxu0 %v138
    %v160 = vpop.f32.mrf.mxu0
    %v161 = vadd.f32 %v131, %v160
    %162 = vdwg.mxu0
    %v163 = vld [vmem:[%s7] sm:$0xff]
    %v164 = vld [vmem:[%s7 + $0x8] sm:$0xff]
    %v165 = vld [vmem:[%s7 + $0x10] sm:$0xff]
    %v166 = vld [vmem:[%s7 + $0x18] sm:$0xff]
    %v168 = vsel %vm133, %v123, 0
    %v171 = vsel %vm133, %v124, 0
    %173 = vmatpush.msra.mxu0 0.0
    %174 = vmatpush.msra.mxu0 0.0
    %175 = vmatpush.msra.mxu0 0.0
    %176 = vmatpush.msra.mxu0 0.0
    %177 = vmatpush.msra.mxu0 0.0
    %178 = vmatpush.msra.mxu0 0.0
    %179 = vmatpush.msra.mxu0 0.0
    %180 = vmatpush.msra.mxu0 0.0
    %181 = vmatpush.msra.mxu0 0.0
    %182 = vmatpush.msra.mxu0 0.0
    %183 = vmatpush.msra.mxu0 0.0
    %184 = vmatpush.msra.mxu0 0.0
    %185 = vmatpush.msra.mxu0 %v166
    %186 = vmatpush.msra.mxu0 %v165
    %187 = vmatpush.msra.mxu0 %v164
    %188 = vmatpush.msra.mxu0 %v163
    %189 = vmatmul.f32.gmra.mxu0 %v168
    %v190 = vpop.f32.mrf.mxu0
    %v191 = vadd.f32 0.0, %v190
    %192 = vmatmul.f32.gmra.mxu0 %v171
    %v193 = vpop.f32.mrf.mxu0
    %v194 = vadd.f32 0.0, %v193
    %195 = vdwg.mxu0
    %v196 = vld [vmem:[%s4] sm:$0xff]
    %v197 = vld [vmem:[%s4 + $0x8] sm:$0xff]
    %v198 = vld [vmem:[%s4 + $0x10] sm:$0xff]
    %v199 = vld [vmem:[%s4 + $0x18] sm:$0xff]
    %v200 = vld [vmem:[%s5] sm:$0x1]
    %v202 = vperm.slane %v200, 0
    %v205 = vsel %vm133, %v105, 0
    %v208 = vsel %vm133, %v106, 0
    %v211 = vsel %vm133, %v107, 0
    %v214 = vsel %vm133, %v108, 0
    %v217 = vsel %vm133, %v109, 0
    %v220 = vsel %vm133, %v110, 0
    %v223 = vsel %vm133, %v111, 0
    %v226 = vsel %vm133, %v112, 0
    %v229 = vsel %vm133, %v113, 0
    %v232 = vsel %vm133, %v114, 0
    %v235 = vsel %vm133, %v115, 0
    %v238 = vsel %vm133, %v116, 0
    %v241 = vsel %vm133, %v117, 0
    %v244 = vsel %vm133, %v118, 0
    %v247 = vsel %vm133, %v119, 0
    %v250 = vsel %vm133, %v120, 0
    %252 = vmatpush.msra.mxu0 0.0
    %253 = vmatpush.msra.mxu0 0.0
    %254 = vmatpush.msra.mxu0 0.0
    %255 = vmatpush.msra.mxu0 0.0
    %256 = vmatpush.msra.mxu0 0.0
    %257 = vmatpush.msra.mxu0 0.0
    %258 = vmatpush.msra.mxu0 0.0
    %259 = vmatpush.msra.mxu0 0.0
    %260 = vmatpush.msra.mxu0 0.0
    %261 = vmatpush.msra.mxu0 0.0
    %262 = vmatpush.msra.mxu0 0.0
    %263 = vmatpush.msra.mxu0 0.0
    %264 = vmatpush.msra.mxu0 %v199
    %265 = vmatpush.msra.mxu0 %v198
    %266 = vmatpush.msra.mxu0 %v197
    %267 = vmatpush.msra.mxu0 %v196
    %268 = vmatmul.f32.gmra.mxu0 %v205
    %v269 = vpop.f32.mrf.mxu0
    %v270 = vadd.f32 %v202, %v269
    %271 = vmatmul.f32.gmra.mxu0 %v208
    %v272 = vpop.f32.mrf.mxu0
    %v273 = vadd.f32 %v202, %v272
    %274 = vmatmul.f32.gmra.mxu0 %v211
    %v275 = vpop.f32.mrf.mxu0
    %v276 = vadd.f32 %v202, %v275
    %277 = vmatmul.f32.gmra.mxu0 %v214
    %v278 = vpop.f32.mrf.mxu0
    %v279 = vadd.f32 %v202, %v278
    %280 = vmatmul.f32.gmra.mxu0 %v217
    %v281 = vpop.f32.mrf.mxu0
    %v282 = vadd.f32 %v202, %v281
    %283 = vmatmul.f32.gmra.mxu0 %v220
    %v284 = vpop.f32.mrf.mxu0
    %v285 = vadd.f32 %v202, %v284
    %286 = vmatmul.f32.gmra.mxu0 %v223
    %v287 = vpop.f32.mrf.mxu0
    %v288 = vadd.f32 %v202, %v287
    %289 = vmatmul.f32.gmra.mxu0 %v226
    %v290 = vpop.f32.mrf.mxu0
    %v291 = vadd.f32 %v202, %v290
    %292 = vmatmul.f32.gmra.mxu0 %v229
    %v293 = vpop.f32.mrf.mxu0
    %v294 = vadd.f32 %v202, %v293
    %295 = vmatmul.f32.gmra.mxu0 %v232
    %v296 = vpop.f32.mrf.mxu0
    %v297 = vadd.f32 %v202, %v296
    %298 = vmatmul.f32.gmra.mxu0 %v235
    %v299 = vpop.f32.mrf.mxu0
    %v300 = vadd.f32 %v202, %v299
    %301 = vmatmul.f32.gmra.mxu0 %v238
    %v302 = vpop.f32.mrf.mxu0
    %v303 = vadd.f32 %v202, %v302
    %304 = vmatmul.f32.gmra.mxu0 %v241
    %v305 = vpop.f32.mrf.mxu0
    %v306 = vadd.f32 %v202, %v305
    %307 = vmatmul.f32.gmra.mxu0 %v244
    %v308 = vpop.f32.mrf.mxu0
    %v309 = vadd.f32 %v202, %v308
    %310 = vmatmul.f32.gmra.mxu0 %v247
    %v311 = vpop.f32.mrf.mxu0
    %v312 = vadd.f32 %v202, %v311
    %313 = vmatmul.f32.gmra.mxu0 %v250
    %v314 = vpop.f32.mrf.mxu0
    %v315 = vadd.f32 %v202, %v314
    %316 = vdwg.mxu0
    %v319 = vrot.slane %v158, 1
    %v320 = vrot.slane %v158, 2
    %v321 = vrot.slane %v158, 3
    %v322 = vrot.slane %v158, 4
    %v323 = vrot.slane %v158, 5
    %v324 = vrot.slane %v158, 6
    %v325 = vrot.slane %v158, 7
    %v326 = vrot.slane %v161, 1
    %v327 = vrot.slane %v161, 2
    %v328 = vrot.slane %v161, 3
    %v329 = vrot.slane %v161, 4
    %v330 = vrot.slane %v161, 5
    %v331 = vrot.slane %v161, 6
    %v332 = vrot.slane %v161, 7
    %v333 = vperm.slane %v158, 0
    %v334 = vperm.slane %v319, 0
    %v335 = vperm.slane %v320, 0
    %v336 = vperm.slane %v321, 0
    %v337 = vperm.slane %v322, 0
    %v338 = vperm.slane %v323, 0
    %v339 = vperm.slane %v324, 0
    %v340 = vperm.slane %v325, 0
    %v341 = vperm.slane %v161, 0
    %v342 = vperm.slane %v326, 0
    %v343 = vperm.slane %v327, 0
    %v344 = vperm.slane %v328, 0
    %v345 = vperm.slane %v329, 0
    %v346 = vperm.slane %v330, 0
    %v347 = vperm.slane %v331, 0
    %v348 = vperm.slane %v332, 0
    %349 = vrot.lane.b32.xlu0 %v333, 64
    %v350 = vpop.permute.xlu0 %349
    %351 = vrot.lane.b32.xlu0 %v334, 64
    %v352 = vpop.permute.xlu0 %351
    %353 = vrot.lane.b32.xlu0 %v335, 64
    %v354 = vpop.permute.xlu0 %353
    %355 = vrot.lane.b32.xlu0 %v336, 64
    %v356 = vpop.permute.xlu0 %355
    %357 = vrot.lane.b32.xlu0 %v337, 64
    %v358 = vpop.permute.xlu0 %357
    %359 = vrot.lane.b32.xlu0 %v338, 64
    %v360 = vpop.permute.xlu0 %359
    %361 = vrot.lane.b32.xlu0 %v339, 64
    %v362 = vpop.permute.xlu0 %361
    %363 = vrot.lane.b32.xlu0 %v340, 64
    %v364 = vpop.permute.xlu0 %363
    %365 = vrot.lane.b32.xlu0 %v341, 64
    %v366 = vpop.permute.xlu0 %365
    %367 = vrot.lane.b32.xlu0 %v342, 64
    %v368 = vpop.permute.xlu0 %367
    %369 = vrot.lane.b32.xlu0 %v343, 64
    %v370 = vpop.permute.xlu0 %369
    %371 = vrot.lane.b32.xlu0 %v344, 64
    %v372 = vpop.permute.xlu0 %371
    %373 = vrot.lane.b32.xlu0 %v345, 64
    %v374 = vpop.permute.xlu0 %373
    %375 = vrot.lane.b32.xlu0 %v346, 64
    %v376 = vpop.permute.xlu0 %375
    %377 = vrot.lane.b32.xlu0 %v347, 64
    %v378 = vpop.permute.xlu0 %377
    %379 = vrot.lane.b32.xlu0 %v348, 64
    %v380 = vpop.permute.xlu0 %379
    %v397 = vadd.f32 %v270, %v350
    %v398 = vadd.f32 %v273, %v352
    %v399 = vadd.f32 %v276, %v354
    %v400 = vadd.f32 %v279, %v356
    %v401 = vadd.f32 %v282, %v358
    %v402 = vadd.f32 %v285, %v360
    %v403 = vadd.f32 %v288, %v362
    %v404 = vadd.f32 %v291, %v364
    %v405 = vadd.f32 %v294, %v366
    %v406 = vadd.f32 %v297, %v368
    %v407 = vadd.f32 %v300, %v370
    %v408 = vadd.f32 %v303, %v372
    %v409 = vadd.f32 %v306, %v374
    %v410 = vadd.f32 %v309, %v376
    %v411 = vadd.f32 %v312, %v378
    %v412 = vadd.f32 %v315, %v380
    %v413 = vtanh.pop %v397
    %v414 = vtanh.pop %v398
    %v415 = vtanh.pop %v399
    %v416 = vtanh.pop %v400
    %v417 = vtanh.pop %v401
    %v418 = vtanh.pop %v402
    %v419 = vtanh.pop %v403
    %v420 = vtanh.pop %v404
    %v421 = vtanh.pop %v405
    %v422 = vtanh.pop %v406
    %v423 = vtanh.pop %v407
    %v424 = vtanh.pop %v408
    %v425 = vtanh.pop %v409
    %v426 = vtanh.pop %v410
    %v427 = vtanh.pop %v411
    %v428 = vtanh.pop %v412
    %v429 = vld [vmem:[%s6] sm:$0x1]
    %v431 = vperm.slane %v429, 0
    %v433 = vmul.f32 %v413, %v431
    %v434 = vmul.f32 %v414, %v431
    %v435 = vmul.f32 %v415, %v431
    %v436 = vmul.f32 %v416, %v431
    %v437 = vmul.f32 %v417, %v431
    %v438 = vmul.f32 %v418, %v431
    %v439 = vmul.f32 %v419, %v431
    %v440 = vmul.f32 %v420, %v431
    %v441 = vmul.f32 %v421, %v431
    %v442 = vmul.f32 %v422, %v431
    %v443 = vmul.f32 %v423, %v431
    %v444 = vmul.f32 %v424, %v431
    %v445 = vmul.f32 %v425, %v431
    %v446 = vmul.f32 %v426, %v431
    %v447 = vmul.f32 %v427, %v431
    %v448 = vmul.f32 %v428, %v431
    %vm449 = vcmask 130048
    %v450 = vsel %vm449, %v433, 0.0
    %451 = vadd.xlane.f32.xlu0 %v450
    %v452 = vpop.xlane.xlu0 %451
    %v453 = vsel %vm449, %v434, 0.0
    %454 = vadd.xlane.f32.xlu0 %v453
    %v455 = vpop.xlane.xlu0 %454
    %v456 = vsel %vm449, %v435, 0.0
    %457 = vadd.xlane.f32.xlu0 %v456
    %v458 = vpop.xlane.xlu0 %457
    %v459 = vsel %vm449, %v436, 0.0
    %460 = vadd.xlane.f32.xlu0 %v459
    %v461 = vpop.xlane.xlu0 %460
    %v462 = vsel %vm449, %v437, 0.0
    %463 = vadd.xlane.f32.xlu0 %v462
    %v464 = vpop.xlane.xlu0 %463
    %v465 = vsel %vm449, %v438, 0.0
    %466 = vadd.xlane.f32.xlu0 %v465
    %v467 = vpop.xlane.xlu0 %466
    %v468 = vsel %vm449, %v439, 0.0
    %469 = vadd.xlane.f32.xlu0 %v468
    %v470 = vpop.xlane.xlu0 %469
    %v471 = vsel %vm449, %v440, 0.0
    %472 = vadd.xlane.f32.xlu0 %v471
    %v473 = vpop.xlane.xlu0 %472
    %v474 = vsel %vm449, %v441, 0.0
    %475 = vadd.xlane.f32.xlu0 %v474
    %v476 = vpop.xlane.xlu0 %475
    %v477 = vsel %vm449, %v442, 0.0
    %478 = vadd.xlane.f32.xlu0 %v477
    %v479 = vpop.xlane.xlu0 %478
    %v480 = vsel %vm449, %v443, 0.0
    %481 = vadd.xlane.f32.xlu0 %v480
    %v482 = vpop.xlane.xlu0 %481
    %v483 = vsel %vm449, %v444, 0.0
    %484 = vadd.xlane.f32.xlu0 %v483
    %v485 = vpop.xlane.xlu0 %484
    %v486 = vsel %vm449, %v445, 0.0
    %487 = vadd.xlane.f32.xlu0 %v486
    %v488 = vpop.xlane.xlu0 %487
    %v489 = vsel %vm449, %v446, 0.0
    %490 = vadd.xlane.f32.xlu0 %v489
    %v491 = vpop.xlane.xlu0 %490
    %v492 = vsel %vm449, %v447, 0.0
    %493 = vadd.xlane.f32.xlu0 %v492
    %v494 = vpop.xlane.xlu0 %493
    %v495 = vsel %vm449, %v448, 0.0
    %496 = vadd.xlane.f32.xlu0 %v495
    %v497 = vpop.xlane.xlu0 %496
    %v498 = vld [vmem:[%s3] sm:$0xff]
    %v499 = vld [vmem:[%s3 + $0x8] sm:$0xff]
    %v502 = vperm.slane %v498, 0
    %v503 = vlaneseq
    %v504 = vshrl.u32 %v503, 7
    %506 = vset.pattern.permute.xlu0 %v504
    %507 = vperm.xlu0 %506, %v502
    %v508 = vpop.permute.xlu0 %507
    %v509 = vperm.slane %v498, 1
    %v510 = vlaneseq
    %v511 = vshrl.u32 %v510, 7
    %513 = vset.pattern.permute.xlu0 %v511
    %514 = vperm.xlu0 %513, %v509
    %v515 = vpop.permute.xlu0 %514
    %v516 = vperm.slane %v498, 2
    %v517 = vlaneseq
    %v518 = vshrl.u32 %v517, 7
    %520 = vset.pattern.permute.xlu0 %v518
    %521 = vperm.xlu0 %520, %v516
    %v522 = vpop.permute.xlu0 %521
    %v523 = vperm.slane %v498, 3
    %v524 = vlaneseq
    %v525 = vshrl.u32 %v524, 7
    %527 = vset.pattern.permute.xlu0 %v525
    %528 = vperm.xlu0 %527, %v523
    %v529 = vpop.permute.xlu0 %528
    %v530 = vperm.slane %v498, 4
    %v531 = vlaneseq
    %v532 = vshrl.u32 %v531, 7
    %534 = vset.pattern.permute.xlu0 %v532
    %535 = vperm.xlu0 %534, %v530
    %v536 = vpop.permute.xlu0 %535
    %v537 = vperm.slane %v498, 5
    %v538 = vlaneseq
    %v539 = vshrl.u32 %v538, 7
    %541 = vset.pattern.permute.xlu0 %v539
    %542 = vperm.xlu0 %541, %v537
    %v543 = vpop.permute.xlu0 %542
    %v544 = vperm.slane %v498, 6
    %v545 = vlaneseq
    %v546 = vshrl.u32 %v545, 7
    %548 = vset.pattern.permute.xlu0 %v546
    %549 = vperm.xlu0 %548, %v544
    %v550 = vpop.permute.xlu0 %549
    %v551 = vperm.slane %v498, 7
    %v552 = vlaneseq
    %v553 = vshrl.u32 %v552, 7
    %555 = vset.pattern.permute.xlu0 %v553
    %556 = vperm.xlu0 %555, %v551
    %v557 = vpop.permute.xlu0 %556
    %v558 = vperm.slane %v499, 0
    %v559 = vlaneseq
    %v560 = vshrl.u32 %v559, 7
    %562 = vset.pattern.permute.xlu0 %v560
    %563 = vperm.xlu0 %562, %v558
    %v564 = vpop.permute.xlu0 %563
    %v565 = vperm.slane %v499, 1
    %v566 = vlaneseq
    %v567 = vshrl.u32 %v566, 7
    %569 = vset.pattern.permute.xlu0 %v567
    %570 = vperm.xlu0 %569, %v565
    %v571 = vpop.permute.xlu0 %570
    %v572 = vperm.slane %v499, 2
    %v573 = vlaneseq
    %v574 = vshrl.u32 %v573, 7
    %576 = vset.pattern.permute.xlu0 %v574
    %577 = vperm.xlu0 %576, %v572
    %v578 = vpop.permute.xlu0 %577
    %v579 = vperm.slane %v499, 3
    %v580 = vlaneseq
    %v581 = vshrl.u32 %v580, 7
    %583 = vset.pattern.permute.xlu0 %v581
    %584 = vperm.xlu0 %583, %v579
    %v585 = vpop.permute.xlu0 %584
    %v586 = vperm.slane %v499, 4
    %v587 = vlaneseq
    %v588 = vshrl.u32 %v587, 7
    %590 = vset.pattern.permute.xlu0 %v588
    %591 = vperm.xlu0 %590, %v586
    %v592 = vpop.permute.xlu0 %591
    %v593 = vperm.slane %v499, 5
    %v594 = vlaneseq
    %v595 = vshrl.u32 %v594, 7
    %597 = vset.pattern.permute.xlu0 %v595
    %598 = vperm.xlu0 %597, %v593
    %v599 = vpop.permute.xlu0 %598
    %v600 = vperm.slane %v499, 6
    %v601 = vlaneseq
    %v602 = vshrl.u32 %v601, 7
    %604 = vset.pattern.permute.xlu0 %v602
    %605 = vperm.xlu0 %604, %v600
    %v606 = vpop.permute.xlu0 %605
    %v607 = vperm.slane %v499, 7
    %v608 = vlaneseq
    %v609 = vshrl.u32 %v608, 7
    %611 = vset.pattern.permute.xlu0 %v609
    %612 = vperm.xlu0 %611, %v607
    %v613 = vpop.permute.xlu0 %612
    %v630 = vadd.f32 %v452, %v508
    %v631 = vadd.f32 %v455, %v515
    %v632 = vadd.f32 %v458, %v522
    %v633 = vadd.f32 %v461, %v529
    %v634 = vadd.f32 %v464, %v536
    %v635 = vadd.f32 %v467, %v543
    %v636 = vadd.f32 %v470, %v550
    %v637 = vadd.f32 %v473, %v557
    %v638 = vadd.f32 %v476, %v564
    %v639 = vadd.f32 %v479, %v571
    %v640 = vadd.f32 %v482, %v578
    %v641 = vadd.f32 %v485, %v585
    %v642 = vadd.f32 %v488, %v592
    %v643 = vadd.f32 %v491, %v599
    %v644 = vadd.f32 %v494, %v606
    %v645 = vadd.f32 %v497, %v613
    %662 = vset.pattern.permute.xlu0 0
    %663 = vperm.xlu0 %662, %v630
    %v664 = vpop.permute.xlu0 %663
    %665 = vset.pattern.permute.xlu0 0
    %666 = vperm.xlu0 %665, %v631
    %v667 = vpop.permute.xlu0 %666
    %668 = vset.pattern.permute.xlu0 0
    %669 = vperm.xlu0 %668, %v632
    %v670 = vpop.permute.xlu0 %669
    %671 = vset.pattern.permute.xlu0 0
    %672 = vperm.xlu0 %671, %v633
    %v673 = vpop.permute.xlu0 %672
    %674 = vset.pattern.permute.xlu0 0
    %675 = vperm.xlu0 %674, %v634
    %v676 = vpop.permute.xlu0 %675
    %677 = vset.pattern.permute.xlu0 0
    %678 = vperm.xlu0 %677, %v635
    %v679 = vpop.permute.xlu0 %678
    %680 = vset.pattern.permute.xlu0 0
    %681 = vperm.xlu0 %680, %v636
    %v682 = vpop.permute.xlu0 %681
    %683 = vset.pattern.permute.xlu0 0
    %684 = vperm.xlu0 %683, %v637
    %v685 = vpop.permute.xlu0 %684
    %686 = vset.pattern.permute.xlu0 0
    %687 = vperm.xlu0 %686, %v638
    %v688 = vpop.permute.xlu0 %687
    %689 = vset.pattern.permute.xlu0 0
    %690 = vperm.xlu0 %689, %v639
    %v691 = vpop.permute.xlu0 %690
    %692 = vset.pattern.permute.xlu0 0
    %693 = vperm.xlu0 %692, %v640
    %v694 = vpop.permute.xlu0 %693
    %695 = vset.pattern.permute.xlu0 0
    %696 = vperm.xlu0 %695, %v641
    %v697 = vpop.permute.xlu0 %696
    %698 = vset.pattern.permute.xlu0 0
    %699 = vperm.xlu0 %698, %v642
    %v700 = vpop.permute.xlu0 %699
    %701 = vset.pattern.permute.xlu0 0
    %702 = vperm.xlu0 %701, %v643
    %v703 = vpop.permute.xlu0 %702
    %704 = vset.pattern.permute.xlu0 0
    %705 = vperm.xlu0 %704, %v644
    %v706 = vpop.permute.xlu0 %705
    %707 = vset.pattern.permute.xlu0 0
    %708 = vperm.xlu0 %707, %v645
    %v709 = vpop.permute.xlu0 %708
    %v710 = vlaneseq
    %v711 = vand.u32 %v710, 127
    %v712 = vperm.slane %v664, %v711
    %v713 = vperm.slane %v667, %v711
    %v714 = vperm.slane %v670, %v711
    %v715 = vperm.slane %v673, %v711
    %v716 = vperm.slane %v676, %v711
    %v717 = vperm.slane %v679, %v711
    %v718 = vperm.slane %v682, %v711
    %v719 = vperm.slane %v685, %v711
    %v720 = vperm.slane %v688, %v711
    %v721 = vperm.slane %v691, %v711
    %v722 = vperm.slane %v694, %v711
    %v723 = vperm.slane %v697, %v711
    %v724 = vperm.slane %v700, %v711
    %v725 = vperm.slane %v703, %v711
    %v726 = vperm.slane %v706, %v711
    %v727 = vperm.slane %v709, %v711
    %vm728 = vcmask 1041409
    %v729 = vsel %vm728, %v713, %v712
    %vm730 = vcmask 1042434
    %v731 = vsel %vm730, %v714, %v729
    %vm732 = vcmask 1043459
    %v733 = vsel %vm732, %v715, %v731
    %vm734 = vcmask 1044484
    %v735 = vsel %vm734, %v716, %v733
    %vm736 = vcmask 1045509
    %v737 = vsel %vm736, %v717, %v735
    %vm738 = vcmask 1046534
    %v739 = vsel %vm738, %v718, %v737
    %vm740 = vcmask 1047559
    %v741 = vsel %vm740, %v719, %v739
    %v742 = vsel %vm728, %v721, %v720
    %v743 = vsel %vm730, %v722, %v742
    %v744 = vsel %vm732, %v723, %v743
    %v745 = vsel %vm734, %v724, %v744
    %v746 = vsel %vm736, %v725, %v745
    %v747 = vsel %vm738, %v726, %v746
    %v748 = vsel %vm740, %v727, %v747
    %vm751 = vcmask 64512
    %v752 = vsel %vm751, %v741, -inf
    %753 = vmax.xlane.f32.xlu0 %v752
    %v754 = vpop.xlane.xlu0 %753
    %v755 = vsel %vm751, %v748, -inf
    %756 = vmax.xlane.f32.xlu0 %v755
    %v757 = vpop.xlane.xlu0 %756
    %v760 = vperm.slane %v754, 0
    %v761 = vperm.slane %v754, 1
    %v762 = vperm.slane %v754, 2
    %v763 = vperm.slane %v754, 3
    %v764 = vperm.slane %v754, 4
    %v765 = vperm.slane %v754, 5
    %v766 = vperm.slane %v754, 6
    %v767 = vperm.slane %v754, 7
    %v768 = vperm.slane %v757, 0
    %v769 = vperm.slane %v757, 1
    %v770 = vperm.slane %v757, 2
    %v771 = vperm.slane %v757, 3
    %v772 = vperm.slane %v757, 4
    %v773 = vperm.slane %v757, 5
    %v774 = vperm.slane %v757, 6
    %v775 = vperm.slane %v757, 7
    %v792 = vsub.f32 %v630, %v760
    %v793 = vsub.f32 %v631, %v761
    %v794 = vsub.f32 %v632, %v762
    %v795 = vsub.f32 %v633, %v763
    %v796 = vsub.f32 %v634, %v764
    %v797 = vsub.f32 %v635, %v765
    %v798 = vsub.f32 %v636, %v766
    %v799 = vsub.f32 %v637, %v767
    %v800 = vsub.f32 %v638, %v768
    %v801 = vsub.f32 %v639, %v769
    %v802 = vsub.f32 %v640, %v770
    %v803 = vsub.f32 %v641, %v771
    %v804 = vsub.f32 %v642, %v772
    %v805 = vsub.f32 %v643, %v773
    %v806 = vsub.f32 %v644, %v774
    %v807 = vsub.f32 %v645, %v775
    %v808 = vmul.f32 %v792, 1.442695
    %v809 = vpow.pop %v808
    %v810 = vmul.f32 %v793, 1.442695
    %v811 = vpow.pop %v810
    %v812 = vmul.f32 %v794, 1.442695
    %v813 = vpow.pop %v812
    %v814 = vmul.f32 %v795, 1.442695
    %v815 = vpow.pop %v814
    %v816 = vmul.f32 %v796, 1.442695
    %v817 = vpow.pop %v816
    %v818 = vmul.f32 %v797, 1.442695
    %v819 = vpow.pop %v818
    %v820 = vmul.f32 %v798, 1.442695
    %v821 = vpow.pop %v820
    %v822 = vmul.f32 %v799, 1.442695
    %v823 = vpow.pop %v822
    %v824 = vmul.f32 %v800, 1.442695
    %v825 = vpow.pop %v824
    %v826 = vmul.f32 %v801, 1.442695
    %v827 = vpow.pop %v826
    %v828 = vmul.f32 %v802, 1.442695
    %v829 = vpow.pop %v828
    %v830 = vmul.f32 %v803, 1.442695
    %v831 = vpow.pop %v830
    %v832 = vmul.f32 %v804, 1.442695
    %v833 = vpow.pop %v832
    %v834 = vmul.f32 %v805, 1.442695
    %v835 = vpow.pop %v834
    %v836 = vmul.f32 %v806, 1.442695
    %v837 = vpow.pop %v836
    %v838 = vmul.f32 %v807, 1.442695
    %v839 = vpow.pop %v838
    %856 = vset.pattern.permute.xlu0 0
    %857 = vperm.xlu0 %856, %v809
    %v858 = vpop.permute.xlu0 %857
    %859 = vset.pattern.permute.xlu0 0
    %860 = vperm.xlu0 %859, %v811
    %v861 = vpop.permute.xlu0 %860
    %862 = vset.pattern.permute.xlu0 0
    %863 = vperm.xlu0 %862, %v813
    %v864 = vpop.permute.xlu0 %863
    %865 = vset.pattern.permute.xlu0 0
    %866 = vperm.xlu0 %865, %v815
    %v867 = vpop.permute.xlu0 %866
    %868 = vset.pattern.permute.xlu0 0
    %869 = vperm.xlu0 %868, %v817
    %v870 = vpop.permute.xlu0 %869
    %871 = vset.pattern.permute.xlu0 0
    %872 = vperm.xlu0 %871, %v819
    %v873 = vpop.permute.xlu0 %872
    %874 = vset.pattern.permute.xlu0 0
    %875 = vperm.xlu0 %874, %v821
    %v876 = vpop.permute.xlu0 %875
    %877 = vset.pattern.permute.xlu0 0
    %878 = vperm.xlu0 %877, %v823
    %v879 = vpop.permute.xlu0 %878
    %880 = vset.pattern.permute.xlu0 0
    %881 = vperm.xlu0 %880, %v825
    %v882 = vpop.permute.xlu0 %881
    %883 = vset.pattern.permute.xlu0 0
    %884 = vperm.xlu0 %883, %v827
    %v885 = vpop.permute.xlu0 %884
    %886 = vset.pattern.permute.xlu0 0
    %887 = vperm.xlu0 %886, %v829
    %v888 = vpop.permute.xlu0 %887
    %889 = vset.pattern.permute.xlu0 0
    %890 = vperm.xlu0 %889, %v831
    %v891 = vpop.permute.xlu0 %890
    %892 = vset.pattern.permute.xlu0 0
    %893 = vperm.xlu0 %892, %v833
    %v894 = vpop.permute.xlu0 %893
    %895 = vset.pattern.permute.xlu0 0
    %896 = vperm.xlu0 %895, %v835
    %v897 = vpop.permute.xlu0 %896
    %898 = vset.pattern.permute.xlu0 0
    %899 = vperm.xlu0 %898, %v837
    %v900 = vpop.permute.xlu0 %899
    %901 = vset.pattern.permute.xlu0 0
    %902 = vperm.xlu0 %901, %v839
    %v903 = vpop.permute.xlu0 %902
    %v904 = vperm.slane %v858, %v711
    %v905 = vperm.slane %v861, %v711
    %v906 = vperm.slane %v864, %v711
    %v907 = vperm.slane %v867, %v711
    %v908 = vperm.slane %v870, %v711
    %v909 = vperm.slane %v873, %v711
    %v910 = vperm.slane %v876, %v711
    %v911 = vperm.slane %v879, %v711
    %v912 = vperm.slane %v882, %v711
    %v913 = vperm.slane %v885, %v711
    %v914 = vperm.slane %v888, %v711
    %v915 = vperm.slane %v891, %v711
    %v916 = vperm.slane %v894, %v711
    %v917 = vperm.slane %v897, %v711
    %v918 = vperm.slane %v900, %v711
    %v919 = vperm.slane %v903, %v711
    %v920 = vsel %vm728, %v905, %v904
    %v921 = vsel %vm730, %v906, %v920
    %v922 = vsel %vm732, %v907, %v921
    %v923 = vsel %vm734, %v908, %v922
    %v924 = vsel %vm736, %v909, %v923
    %v925 = vsel %vm738, %v910, %v924
    %v926 = vsel %vm740, %v911, %v925
    %v927 = vsel %vm728, %v913, %v912
    %v928 = vsel %vm730, %v914, %v927
    %v929 = vsel %vm732, %v915, %v928
    %v930 = vsel %vm734, %v916, %v929
    %v931 = vsel %vm736, %v917, %v930
    %v932 = vsel %vm738, %v918, %v931
    %v933 = vsel %vm740, %v919, %v932
    %v936 = vsel %vm751, %v926, 0.0
    %937 = vadd.xlane.f32.xlu0 %v936
    %v938 = vpop.xlane.xlu0 %937
    %v939 = vsel %vm751, %v933, 0.0
    %940 = vadd.xlane.f32.xlu0 %v939
    %v941 = vpop.xlane.xlu0 %940
    %v944 = vperm.slane %v938, 0
    %v945 = vperm.slane %v938, 1
    %v946 = vperm.slane %v938, 2
    %v947 = vperm.slane %v938, 3
    %v948 = vperm.slane %v938, 4
    %v949 = vperm.slane %v938, 5
    %v950 = vperm.slane %v938, 6
    %v951 = vperm.slane %v938, 7
    %v952 = vperm.slane %v941, 0
    %v953 = vperm.slane %v941, 1
    %v954 = vperm.slane %v941, 2
    %v955 = vperm.slane %v941, 3
    %v956 = vperm.slane %v941, 4
    %v957 = vperm.slane %v941, 5
    %v958 = vperm.slane %v941, 6
    %v959 = vperm.slane %v941, 7
    %v976 = vrcp.pop %v944
    %v977 = vmul.f32 %v944, %v976
    %v978 = vsub.f32 1.0, %v977
    %v979 = vmul.f32 %v976, %v978
    %v980 = vadd.f32 %v976, %v979
    %vm981 = vweird.f32 %v944
    %vm982 = vweird.f32 %v976
    %vm983 = vmor %vm981, %vm982
    %v984 = vsel %vm983, %v976, %v980
    %v985 = vand.u32 2147483647, %v944
    %vm986 = vcmp.eq.f32.partialorder %v985, 8.507059e+37
    %v987 = vand.u32 %v944, 2147483648
    %v988 = vor.u32 1.1754944e-38, %v987
    %v989 = vsel %vm986, %v988, %v984
    %v990 = vmul.f32 %v809, %v989
    %v991 = vrcp.pop %v945
    %v992 = vmul.f32 %v945, %v991
    %v993 = vsub.f32 1.0, %v992
    %v994 = vmul.f32 %v991, %v993
    %v995 = vadd.f32 %v991, %v994
    %vm996 = vweird.f32 %v945
    %vm997 = vweird.f32 %v991
    %vm998 = vmor %vm996, %vm997
    %v999 = vsel %vm998, %v991, %v995
    %v1000 = vand.u32 2147483647, %v945
    %vm1001 = vcmp.eq.f32.partialorder %v1000, 8.507059e+37
    %v1002 = vand.u32 %v945, 2147483648
    %v1003 = vor.u32 1.1754944e-38, %v1002
    %v1004 = vsel %vm1001, %v1003, %v999
    %v1005 = vmul.f32 %v811, %v1004
    %v1006 = vrcp.pop %v946
    %v1007 = vmul.f32 %v946, %v1006
    %v1008 = vsub.f32 1.0, %v1007
    %v1009 = vmul.f32 %v1006, %v1008
    %v1010 = vadd.f32 %v1006, %v1009
    %vm1011 = vweird.f32 %v946
    %vm1012 = vweird.f32 %v1006
    %vm1013 = vmor %vm1011, %vm1012
    %v1014 = vsel %vm1013, %v1006, %v1010
    %v1015 = vand.u32 2147483647, %v946
    %vm1016 = vcmp.eq.f32.partialorder %v1015, 8.507059e+37
    %v1017 = vand.u32 %v946, 2147483648
    %v1018 = vor.u32 1.1754944e-38, %v1017
    %v1019 = vsel %vm1016, %v1018, %v1014
    %v1020 = vmul.f32 %v813, %v1019
    %v1021 = vrcp.pop %v947
    %v1022 = vmul.f32 %v947, %v1021
    %v1023 = vsub.f32 1.0, %v1022
    %v1024 = vmul.f32 %v1021, %v1023
    %v1025 = vadd.f32 %v1021, %v1024
    %vm1026 = vweird.f32 %v947
    %vm1027 = vweird.f32 %v1021
    %vm1028 = vmor %vm1026, %vm1027
    %v1029 = vsel %vm1028, %v1021, %v1025
    %v1030 = vand.u32 2147483647, %v947
    %vm1031 = vcmp.eq.f32.partialorder %v1030, 8.507059e+37
    %v1032 = vand.u32 %v947, 2147483648
    %v1033 = vor.u32 1.1754944e-38, %v1032
    %v1034 = vsel %vm1031, %v1033, %v1029
    %v1035 = vmul.f32 %v815, %v1034
    %v1036 = vrcp.pop %v948
    %v1037 = vmul.f32 %v948, %v1036
    %v1038 = vsub.f32 1.0, %v1037
    %v1039 = vmul.f32 %v1036, %v1038
    %v1040 = vadd.f32 %v1036, %v1039
    %vm1041 = vweird.f32 %v948
    %vm1042 = vweird.f32 %v1036
    %vm1043 = vmor %vm1041, %vm1042
    %v1044 = vsel %vm1043, %v1036, %v1040
    %v1045 = vand.u32 2147483647, %v948
    %vm1046 = vcmp.eq.f32.partialorder %v1045, 8.507059e+37
    %v1047 = vand.u32 %v948, 2147483648
    %v1048 = vor.u32 1.1754944e-38, %v1047
    %v1049 = vsel %vm1046, %v1048, %v1044
    %v1050 = vmul.f32 %v817, %v1049
    %v1051 = vrcp.pop %v949
    %v1052 = vmul.f32 %v949, %v1051
    %v1053 = vsub.f32 1.0, %v1052
    %v1054 = vmul.f32 %v1051, %v1053
    %v1055 = vadd.f32 %v1051, %v1054
    %vm1056 = vweird.f32 %v949
    %vm1057 = vweird.f32 %v1051
    %vm1058 = vmor %vm1056, %vm1057
    %v1059 = vsel %vm1058, %v1051, %v1055
    %v1060 = vand.u32 2147483647, %v949
    %vm1061 = vcmp.eq.f32.partialorder %v1060, 8.507059e+37
    %v1062 = vand.u32 %v949, 2147483648
    %v1063 = vor.u32 1.1754944e-38, %v1062
    %v1064 = vsel %vm1061, %v1063, %v1059
    %v1065 = vmul.f32 %v819, %v1064
    %v1066 = vrcp.pop %v950
    %v1067 = vmul.f32 %v950, %v1066
    %v1068 = vsub.f32 1.0, %v1067
    %v1069 = vmul.f32 %v1066, %v1068
    %v1070 = vadd.f32 %v1066, %v1069
    %vm1071 = vweird.f32 %v950
    %vm1072 = vweird.f32 %v1066
    %vm1073 = vmor %vm1071, %vm1072
    %v1074 = vsel %vm1073, %v1066, %v1070
    %v1075 = vand.u32 2147483647, %v950
    %vm1076 = vcmp.eq.f32.partialorder %v1075, 8.507059e+37
    %v1077 = vand.u32 %v950, 2147483648
    %v1078 = vor.u32 1.1754944e-38, %v1077
    %v1079 = vsel %vm1076, %v1078, %v1074
    %v1080 = vmul.f32 %v821, %v1079
    %v1081 = vrcp.pop %v951
    %v1082 = vmul.f32 %v951, %v1081
    %v1083 = vsub.f32 1.0, %v1082
    %v1084 = vmul.f32 %v1081, %v1083
    %v1085 = vadd.f32 %v1081, %v1084
    %vm1086 = vweird.f32 %v951
    %vm1087 = vweird.f32 %v1081
    %vm1088 = vmor %vm1086, %vm1087
    %v1089 = vsel %vm1088, %v1081, %v1085
    %v1090 = vand.u32 2147483647, %v951
    %vm1091 = vcmp.eq.f32.partialorder %v1090, 8.507059e+37
    %v1092 = vand.u32 %v951, 2147483648
    %v1093 = vor.u32 1.1754944e-38, %v1092
    %v1094 = vsel %vm1091, %v1093, %v1089
    %v1095 = vmul.f32 %v823, %v1094
    %v1096 = vrcp.pop %v952
    %v1097 = vmul.f32 %v952, %v1096
    %v1098 = vsub.f32 1.0, %v1097
    %v1099 = vmul.f32 %v1096, %v1098
    %v1100 = vadd.f32 %v1096, %v1099
    %vm1101 = vweird.f32 %v952
    %vm1102 = vweird.f32 %v1096
    %vm1103 = vmor %vm1101, %vm1102
    %v1104 = vsel %vm1103, %v1096, %v1100
    %v1105 = vand.u32 2147483647, %v952
    %vm1106 = vcmp.eq.f32.partialorder %v1105, 8.507059e+37
    %v1107 = vand.u32 %v952, 2147483648
    %v1108 = vor.u32 1.1754944e-38, %v1107
    %v1109 = vsel %vm1106, %v1108, %v1104
    %v1110 = vmul.f32 %v825, %v1109
    %v1111 = vrcp.pop %v953
    %v1112 = vmul.f32 %v953, %v1111
    %v1113 = vsub.f32 1.0, %v1112
    %v1114 = vmul.f32 %v1111, %v1113
    %v1115 = vadd.f32 %v1111, %v1114
    %vm1116 = vweird.f32 %v953
    %vm1117 = vweird.f32 %v1111
    %vm1118 = vmor %vm1116, %vm1117
    %v1119 = vsel %vm1118, %v1111, %v1115
    %v1120 = vand.u32 2147483647, %v953
    %vm1121 = vcmp.eq.f32.partialorder %v1120, 8.507059e+37
    %v1122 = vand.u32 %v953, 2147483648
    %v1123 = vor.u32 1.1754944e-38, %v1122
    %v1124 = vsel %vm1121, %v1123, %v1119
    %v1125 = vmul.f32 %v827, %v1124
    %v1126 = vrcp.pop %v954
    %v1127 = vmul.f32 %v954, %v1126
    %v1128 = vsub.f32 1.0, %v1127
    %v1129 = vmul.f32 %v1126, %v1128
    %v1130 = vadd.f32 %v1126, %v1129
    %vm1131 = vweird.f32 %v954
    %vm1132 = vweird.f32 %v1126
    %vm1133 = vmor %vm1131, %vm1132
    %v1134 = vsel %vm1133, %v1126, %v1130
    %v1135 = vand.u32 2147483647, %v954
    %vm1136 = vcmp.eq.f32.partialorder %v1135, 8.507059e+37
    %v1137 = vand.u32 %v954, 2147483648
    %v1138 = vor.u32 1.1754944e-38, %v1137
    %v1139 = vsel %vm1136, %v1138, %v1134
    %v1140 = vmul.f32 %v829, %v1139
    %v1141 = vrcp.pop %v955
    %v1142 = vmul.f32 %v955, %v1141
    %v1143 = vsub.f32 1.0, %v1142
    %v1144 = vmul.f32 %v1141, %v1143
    %v1145 = vadd.f32 %v1141, %v1144
    %vm1146 = vweird.f32 %v955
    %vm1147 = vweird.f32 %v1141
    %vm1148 = vmor %vm1146, %vm1147
    %v1149 = vsel %vm1148, %v1141, %v1145
    %v1150 = vand.u32 2147483647, %v955
    %vm1151 = vcmp.eq.f32.partialorder %v1150, 8.507059e+37
    %v1152 = vand.u32 %v955, 2147483648
    %v1153 = vor.u32 1.1754944e-38, %v1152
    %v1154 = vsel %vm1151, %v1153, %v1149
    %v1155 = vmul.f32 %v831, %v1154
    %v1156 = vrcp.pop %v956
    %v1157 = vmul.f32 %v956, %v1156
    %v1158 = vsub.f32 1.0, %v1157
    %v1159 = vmul.f32 %v1156, %v1158
    %v1160 = vadd.f32 %v1156, %v1159
    %vm1161 = vweird.f32 %v956
    %vm1162 = vweird.f32 %v1156
    %vm1163 = vmor %vm1161, %vm1162
    %v1164 = vsel %vm1163, %v1156, %v1160
    %v1165 = vand.u32 2147483647, %v956
    %vm1166 = vcmp.eq.f32.partialorder %v1165, 8.507059e+37
    %v1167 = vand.u32 %v956, 2147483648
    %v1168 = vor.u32 1.1754944e-38, %v1167
    %v1169 = vsel %vm1166, %v1168, %v1164
    %v1170 = vmul.f32 %v833, %v1169
    %v1171 = vrcp.pop %v957
    %v1172 = vmul.f32 %v957, %v1171
    %v1173 = vsub.f32 1.0, %v1172
    %v1174 = vmul.f32 %v1171, %v1173
    %v1175 = vadd.f32 %v1171, %v1174
    %vm1176 = vweird.f32 %v957
    %vm1177 = vweird.f32 %v1171
    %vm1178 = vmor %vm1176, %vm1177
    %v1179 = vsel %vm1178, %v1171, %v1175
    %v1180 = vand.u32 2147483647, %v957
    %vm1181 = vcmp.eq.f32.partialorder %v1180, 8.507059e+37
    %v1182 = vand.u32 %v957, 2147483648
    %v1183 = vor.u32 1.1754944e-38, %v1182
    %v1184 = vsel %vm1181, %v1183, %v1179
    %v1185 = vmul.f32 %v835, %v1184
    %v1186 = vrcp.pop %v958
    %v1187 = vmul.f32 %v958, %v1186
    %v1188 = vsub.f32 1.0, %v1187
    %v1189 = vmul.f32 %v1186, %v1188
    %v1190 = vadd.f32 %v1186, %v1189
    %vm1191 = vweird.f32 %v958
    %vm1192 = vweird.f32 %v1186
    %vm1193 = vmor %vm1191, %vm1192
    %v1194 = vsel %vm1193, %v1186, %v1190
    %v1195 = vand.u32 2147483647, %v958
    %vm1196 = vcmp.eq.f32.partialorder %v1195, 8.507059e+37
    %v1197 = vand.u32 %v958, 2147483648
    %v1198 = vor.u32 1.1754944e-38, %v1197
    %v1199 = vsel %vm1196, %v1198, %v1194
    %v1200 = vmul.f32 %v837, %v1199
    %v1201 = vrcp.pop %v959
    %v1202 = vmul.f32 %v959, %v1201
    %v1203 = vsub.f32 1.0, %v1202
    %v1204 = vmul.f32 %v1201, %v1203
    %v1205 = vadd.f32 %v1201, %v1204
    %vm1206 = vweird.f32 %v959
    %vm1207 = vweird.f32 %v1201
    %vm1208 = vmor %vm1206, %vm1207
    %v1209 = vsel %vm1208, %v1201, %v1205
    %v1210 = vand.u32 2147483647, %v959
    %vm1211 = vcmp.eq.f32.partialorder %v1210, 8.507059e+37
    %v1212 = vand.u32 %v959, 2147483648
    %v1213 = vor.u32 1.1754944e-38, %v1212
    %v1214 = vsel %vm1211, %v1213, %v1209
    %v1215 = vmul.f32 %v839, %v1214
    %1217 = vset.pattern.permute.xlu0 0
    %1218 = vperm.xlu0 %1217, %v990
    %v1219 = vpop.permute.xlu0 %1218
    %1222 = vset.pattern.permute.xlu0 0
    %1223 = vperm.xlu0 %1222, %v1005
    %v1224 = vpop.permute.xlu0 %1223
    %1227 = vset.pattern.permute.xlu0 0
    %1228 = vperm.xlu0 %1227, %v1020
    %v1229 = vpop.permute.xlu0 %1228
    %1232 = vset.pattern.permute.xlu0 0
    %1233 = vperm.xlu0 %1232, %v1035
    %v1234 = vpop.permute.xlu0 %1233
    %1237 = vset.pattern.permute.xlu0 0
    %1238 = vperm.xlu0 %1237, %v1050
    %v1239 = vpop.permute.xlu0 %1238
    %1242 = vset.pattern.permute.xlu0 0
    %1243 = vperm.xlu0 %1242, %v1065
    %v1244 = vpop.permute.xlu0 %1243
    %1247 = vset.pattern.permute.xlu0 0
    %1248 = vperm.xlu0 %1247, %v1080
    %v1249 = vpop.permute.xlu0 %1248
    %1252 = vset.pattern.permute.xlu0 0
    %1253 = vperm.xlu0 %1252, %v1095
    %v1254 = vpop.permute.xlu0 %1253
    %1257 = vset.pattern.permute.xlu0 0
    %1258 = vperm.xlu0 %1257, %v1110
    %v1259 = vpop.permute.xlu0 %1258
    %1262 = vset.pattern.permute.xlu0 0
    %1263 = vperm.xlu0 %1262, %v1125
    %v1264 = vpop.permute.xlu0 %1263
    %1267 = vset.pattern.permute.xlu0 0
    %1268 = vperm.xlu0 %1267, %v1140
    %v1269 = vpop.permute.xlu0 %1268
    %1272 = vset.pattern.permute.xlu0 0
    %1273 = vperm.xlu0 %1272, %v1155
    %v1274 = vpop.permute.xlu0 %1273
    %1277 = vset.pattern.permute.xlu0 0
    %1278 = vperm.xlu0 %1277, %v1170
    %v1279 = vpop.permute.xlu0 %1278
    %1282 = vset.pattern.permute.xlu0 0
    %1283 = vperm.xlu0 %1282, %v1185
    %v1284 = vpop.permute.xlu0 %1283
    %1287 = vset.pattern.permute.xlu0 0
    %1288 = vperm.xlu0 %1287, %v1200
    %v1289 = vpop.permute.xlu0 %1288
    %1292 = vset.pattern.permute.xlu0 0
    %1293 = vperm.xlu0 %1292, %v1215
    %v1294 = vpop.permute.xlu0 %1293
    %v1296 = vmul.f32 %v105, %v1219
    %v1297 = vmul.f32 %v106, %v1224
    %v1298 = vmul.f32 %v107, %v1229
    %v1299 = vmul.f32 %v108, %v1234
    %v1300 = vmul.f32 %v109, %v1239
    %v1301 = vmul.f32 %v110, %v1244
    %v1302 = vmul.f32 %v111, %v1249
    %v1303 = vmul.f32 %v112, %v1254
    %v1304 = vmul.f32 %v113, %v1259
    %v1305 = vmul.f32 %v114, %v1264
    %v1306 = vmul.f32 %v115, %v1269
    %v1307 = vmul.f32 %v116, %v1274
    %v1308 = vmul.f32 %v117, %v1279
    %v1309 = vmul.f32 %v118, %v1284
    %v1310 = vmul.f32 %v119, %v1289
    %v1311 = vmul.f32 %v120, %v1294
    %v1312 = vsel %vm133, %v1296, 0.0
    %v1313 = vrot.slane %v1312, 4
    %v1314 = vadd.f32 %v1312, %v1313
    %v1315 = vrot.slane %v1314, 2
    %v1316 = vadd.f32 %v1314, %v1315
    %v1317 = vrot.slane %v1316, 1
    %v1318 = vadd.f32 %v1316, %v1317
    %v1319 = vsel %vm133, %v1297, 0.0
    %v1320 = vrot.slane %v1319, 4
    %v1321 = vadd.f32 %v1319, %v1320
    %v1322 = vrot.slane %v1321, 2
    %v1323 = vadd.f32 %v1321, %v1322
    %v1324 = vrot.slane %v1323, 1
    %v1325 = vadd.f32 %v1323, %v1324
    %v1326 = vsel %vm133, %v1298, 0.0
    %v1327 = vrot.slane %v1326, 4
    %v1328 = vadd.f32 %v1326, %v1327
    %v1329 = vrot.slane %v1328, 2
    %v1330 = vadd.f32 %v1328, %v1329
    %v1331 = vrot.slane %v1330, 1
    %v1332 = vadd.f32 %v1330, %v1331
    %v1333 = vsel %vm133, %v1299, 0.0
    %v1334 = vrot.slane %v1333, 4
    %v1335 = vadd.f32 %v1333, %v1334
    %v1336 = vrot.slane %v1335, 2
    %v1337 = vadd.f32 %v1335, %v1336
    %v1338 = vrot.slane %v1337, 1
    %v1339 = vadd.f32 %v1337, %v1338
    %v1340 = vsel %vm133, %v1300, 0.0
    %v1341 = vrot.slane %v1340, 4
    %v1342 = vadd.f32 %v1340, %v1341
    %v1343 = vrot.slane %v1342, 2
    %v1344 = vadd.f32 %v1342, %v1343
    %v1345 = vrot.slane %v1344, 1
    %v1346 = vadd.f32 %v1344, %v1345
    %v1347 = vsel %vm133, %v1301, 0.0
    %v1348 = vrot.slane %v1347, 4
    %v1349 = vadd.f32 %v1347, %v1348
    %v1350 = vrot.slane %v1349, 2
    %v1351 = vadd.f32 %v1349, %v1350
    %v1352 = vrot.slane %v1351, 1
    %v1353 = vadd.f32 %v1351, %v1352
    %v1354 = vsel %vm133, %v1302, 0.0
    %v1355 = vrot.slane %v1354, 4
    %v1356 = vadd.f32 %v1354, %v1355
    %v1357 = vrot.slane %v1356, 2
    %v1358 = vadd.f32 %v1356, %v1357
    %v1359 = vrot.slane %v1358, 1
    %v1360 = vadd.f32 %v1358, %v1359
    %v1361 = vsel %vm133, %v1303, 0.0
    %v1362 = vrot.slane %v1361, 4
    %v1363 = vadd.f32 %v1361, %v1362
    %v1364 = vrot.slane %v1363, 2
    %v1365 = vadd.f32 %v1363, %v1364
    %v1366 = vrot.slane %v1365, 1
    %v1367 = vadd.f32 %v1365, %v1366
    %v1368 = vsel %vm133, %v1304, 0.0
    %v1369 = vrot.slane %v1368, 4
    %v1370 = vadd.f32 %v1368, %v1369
    %v1371 = vrot.slane %v1370, 2
    %v1372 = vadd.f32 %v1370, %v1371
    %v1373 = vrot.slane %v1372, 1
    %v1374 = vadd.f32 %v1372, %v1373
    %v1375 = vsel %vm133, %v1305, 0.0
    %v1376 = vrot.slane %v1375, 4
    %v1377 = vadd.f32 %v1375, %v1376
    %v1378 = vrot.slane %v1377, 2
    %v1379 = vadd.f32 %v1377, %v1378
    %v1380 = vrot.slane %v1379, 1
    %v1381 = vadd.f32 %v1379, %v1380
    %v1382 = vsel %vm133, %v1306, 0.0
    %v1383 = vrot.slane %v1382, 4
    %v1384 = vadd.f32 %v1382, %v1383
    %v1385 = vrot.slane %v1384, 2
    %v1386 = vadd.f32 %v1384, %v1385
    %v1387 = vrot.slane %v1386, 1
    %v1388 = vadd.f32 %v1386, %v1387
    %v1389 = vsel %vm133, %v1307, 0.0
    %v1390 = vrot.slane %v1389, 4
    %v1391 = vadd.f32 %v1389, %v1390
    %v1392 = vrot.slane %v1391, 2
    %v1393 = vadd.f32 %v1391, %v1392
    %v1394 = vrot.slane %v1393, 1
    %v1395 = vadd.f32 %v1393, %v1394
    %v1396 = vsel %vm133, %v1308, 0.0
    %v1397 = vrot.slane %v1396, 4
    %v1398 = vadd.f32 %v1396, %v1397
    %v1399 = vrot.slane %v1398, 2
    %v1400 = vadd.f32 %v1398, %v1399
    %v1401 = vrot.slane %v1400, 1
    %v1402 = vadd.f32 %v1400, %v1401
    %v1403 = vsel %vm133, %v1309, 0.0
    %v1404 = vrot.slane %v1403, 4
    %v1405 = vadd.f32 %v1403, %v1404
    %v1406 = vrot.slane %v1405, 2
    %v1407 = vadd.f32 %v1405, %v1406
    %v1408 = vrot.slane %v1407, 1
    %v1409 = vadd.f32 %v1407, %v1408
    %v1410 = vsel %vm133, %v1310, 0.0
    %v1411 = vrot.slane %v1410, 4
    %v1412 = vadd.f32 %v1410, %v1411
    %v1413 = vrot.slane %v1412, 2
    %v1414 = vadd.f32 %v1412, %v1413
    %v1415 = vrot.slane %v1414, 1
    %v1416 = vadd.f32 %v1414, %v1415
    %v1417 = vsel %vm133, %v1311, 0.0
    %v1418 = vrot.slane %v1417, 4
    %v1419 = vadd.f32 %v1417, %v1418
    %v1420 = vrot.slane %v1419, 2
    %v1421 = vadd.f32 %v1419, %v1420
    %v1422 = vrot.slane %v1421, 1
    %v1423 = vadd.f32 %v1421, %v1422
    %v1424 = vld [vmem:[#allocation8] sm:$0xff]
    %v1425 = vld [vmem:[#allocation8 + $0x8] sm:$0xff]
    %v1426 = vld [vmem:[#allocation8 + $0x10] sm:$0xff]
    %v1427 = vld [vmem:[#allocation8 + $0x18] sm:$0xff]
    %v1428 = vld [vmem:[%s11] sm:$0x1]
    %v1430 = vperm.slane %v1428, 0
    %v1448 = vsel %vm728, %v1325, %v1318
    %v1449 = vsel %vm730, %v1332, %v1448
    %v1450 = vsel %vm732, %v1339, %v1449
    %v1451 = vsel %vm734, %v1346, %v1450
    %v1452 = vsel %vm736, %v1353, %v1451
    %v1453 = vsel %vm738, %v1360, %v1452
    %v1454 = vsel %vm740, %v1367, %v1453
    %v1455 = vsel %vm728, %v1381, %v1374
    %v1456 = vsel %vm730, %v1388, %v1455
    %v1457 = vsel %vm732, %v1395, %v1456
    %v1458 = vsel %vm734, %v1402, %v1457
    %v1459 = vsel %vm736, %v1409, %v1458
    %v1460 = vsel %vm738, %v1416, %v1459
    %v1461 = vsel %vm740, %v1423, %v1460
    %v1462 = vsel %vm133, %v1454, 0
    %v1464 = vsel %vm133, %v1461, 0
    %1466 = vmatpush.msra.mxu0 0.0
    %1467 = vmatpush.msra.mxu0 0.0
    %1468 = vmatpush.msra.mxu0 0.0
    %1469 = vmatpush.msra.mxu0 0.0
    %1470 = vmatpush.msra.mxu0 0.0
    %1471 = vmatpush.msra.mxu0 0.0
    %1472 = vmatpush.msra.mxu0 0.0
    %1473 = vmatpush.msra.mxu0 0.0
    %1474 = vmatpush.msra.mxu0 0.0
    %1475 = vmatpush.msra.mxu0 0.0
    %1476 = vmatpush.msra.mxu0 0.0
    %1477 = vmatpush.msra.mxu0 0.0
    %1478 = vmatpush.msra.mxu0 %v1427
    %1479 = vmatpush.msra.mxu0 %v1426
    %1480 = vmatpush.msra.mxu0 %v1425
    %1481 = vmatpush.msra.mxu0 %v1424
    %1482 = vmatmul.f32.gmra.mxu0 %v1462
    %v1483 = vpop.f32.mrf.mxu0
    %v1484 = vadd.f32 %v1430, %v1483
    %1485 = vmatmul.f32.gmra.mxu0 %v1464
    %v1486 = vpop.f32.mrf.mxu0
    %v1487 = vadd.f32 %v1430, %v1486
    %1488 = vdwg.mxu0
    %v1489 = vadd.f32 %v191, %v158
    %v1490 = vadd.f32 %v194, %v161
    %v1491 = vadd.f32 %v1489, %v1484
    %v1492 = vadd.f32 %v1490, %v1487
    %v1493 = vxor.u32 %v1491, 2147483648
    %v1494 = vxor.u32 %v1492, 2147483648
    %v1495 = vmul.f32 %v1493, 1.442695
    %v1496 = vpow.pop %v1495
    %v1497 = vmul.f32 %v1494, 1.442695
    %v1498 = vpow.pop %v1497
    %v1499 = vadd.f32 %v1496, 1.0
    %v1500 = vadd.f32 %v1498, 1.0
    %v1501 = vrcp.pop %v1499
    %v1502 = vmul.f32 %v1499, %v1501
    %v1503 = vsub.f32 1.0, %v1502
    %v1504 = vmul.f32 %v1501, %v1503
    %v1505 = vadd.f32 %v1501, %v1504
    %vm1506 = vweird.f32 %v1499
    %vm1507 = vweird.f32 %v1501
    %vm1508 = vmor %vm1506, %vm1507
    %v1509 = vsel %vm1508, %v1501, %v1505
    %v1510 = vand.u32 2147483647, %v1499
    %vm1511 = vcmp.eq.f32.partialorder %v1510, 8.507059e+37
    %v1512 = vand.u32 %v1499, 2147483648
    %v1513 = vor.u32 1.1754944e-38, %v1512
    %v1514 = vsel %vm1511, %v1513, %v1509
    %v1515 = vmul.f32 1.0, %v1514
    %v1516 = vrcp.pop %v1500
    %v1517 = vmul.f32 %v1500, %v1516
    %v1518 = vsub.f32 1.0, %v1517
    %v1519 = vmul.f32 %v1516, %v1518
    %v1520 = vadd.f32 %v1516, %v1519
    %vm1521 = vweird.f32 %v1500
    %vm1522 = vweird.f32 %v1516
    %vm1523 = vmor %vm1521, %vm1522
    %v1524 = vsel %vm1523, %v1516, %v1520
    %v1525 = vand.u32 2147483647, %v1500
    %vm1526 = vcmp.eq.f32.partialorder %v1525, 8.507059e+37
    %v1527 = vand.u32 %v1500, 2147483648
    %v1528 = vor.u32 1.1754944e-38, %v1527
    %v1529 = vsel %vm1526, %v1528, %v1524
    %v1530 = vmul.f32 1.0, %v1529
    %v1531 = vtanh.pop %v1484
    %v1532 = vtanh.pop %v1487
    %v1533 = vtanh.pop %v1489
    %v1534 = vtanh.pop %v1490
    %1537 = vrot.lane.b32.xlu0 %v1531, 96
    %v1538 = vpop.permute.xlu0 %1537
    %1539 = vrot.lane.b32.xlu0 %v1532, 96
    %v1540 = vpop.permute.xlu0 %1539
    %v1543 = vmul.f32 %v1515, %v1538
    %v1544 = vmul.f32 %v1530, %v1540
    %v1545 = vsub.f32 1.0, %v1515
    %v1546 = vsub.f32 1.0, %v1530
    %1549 = vrot.lane.b32.xlu0 %v1533, 96
    %v1550 = vpop.permute.xlu0 %1549
    %1551 = vrot.lane.b32.xlu0 %v1534, 96
    %v1552 = vpop.permute.xlu0 %1551
    %v1555 = vmul.f32 %v1545, %v1550
    %v1556 = vmul.f32 %v1546, %v1552
    %v1557 = vadd.f32 %v1543, %v1555
    %v1558 = vadd.f32 %v1544, %v1556
    %1559 = vst.msk [vmem:[#allocation10] sm:$0xff] %vm133, %v1557
    %1560 = vst.msk [vmem:[#allocation10 + $0x8] sm:$0xff] %vm133, %v1558
    %v1561 = vadd.s32 %v711, 4294967264
    %v1562 = vperm.slane %v1219, %v1561
    %v1563 = vperm.slane %v1224, %v1561
    %v1564 = vperm.slane %v1229, %v1561
    %v1565 = vperm.slane %v1234, %v1561
    %v1566 = vperm.slane %v1239, %v1561
    %v1567 = vperm.slane %v1244, %v1561
    %v1568 = vperm.slane %v1249, %v1561
    %v1569 = vperm.slane %v1254, %v1561
    %v1570 = vperm.slane %v1259, %v1561
    %v1571 = vperm.slane %v1264, %v1561
    %v1572 = vperm.slane %v1269, %v1561
    %v1573 = vperm.slane %v1274, %v1561
    %v1574 = vperm.slane %v1279, %v1561
    %v1575 = vperm.slane %v1284, %v1561
    %v1576 = vperm.slane %v1289, %v1561
    %v1577 = vperm.slane %v1294, %v1561
    %v1578 = vsel %vm728, %v1563, %v1562
    %v1579 = vsel %vm730, %v1564, %v1578
    %v1580 = vsel %vm732, %v1565, %v1579
    %v1581 = vsel %vm734, %v1566, %v1580
    %v1582 = vsel %vm736, %v1567, %v1581
    %v1583 = vsel %vm738, %v1568, %v1582
    %v1584 = vsel %vm740, %v1569, %v1583
    %v1585 = vsel %vm728, %v1571, %v1570
    %v1586 = vsel %vm730, %v1572, %v1585
    %v1587 = vsel %vm732, %v1573, %v1586
    %v1588 = vsel %vm734, %v1574, %v1587
    %v1589 = vsel %vm736, %v1575, %v1588
    %v1590 = vsel %vm738, %v1576, %v1589
    %v1591 = vsel %vm740, %v1577, %v1590
    %vm1594 = vcmask 326912
    %1595 = vst.msk [vmem:[#allocation10] sm:$0xff] %vm1594, %v1584
    %1596 = vst.msk [vmem:[#allocation10 + $0x8] sm:$0xff] %vm1594, %v1591
    // Predicated region
    $region66: #{tpu_custom_call.1} parent=1 // pred_check
      _
    $region67: #{tpu_custom_call.1} parent=1 // pred_check_branch
      %1598 = sbr.rel (0) target = $region69
    $region68: #{tpu_custom_call.1} parent=1 // pred_region
      %1600 = vsyncadd [#allocation4], 0
      %s1601 = sshll.u32 [#allocation10], 4
      %s1602 = int_to_ptr.vmem [resolvable:$true] %s1601
      %s1603 = sshll.u32 %s12, 4
      %s1604 = int_to_ptr.hbm [resolvable:$true] %s1603
      %1609 = dma.vmem_to_hbm [thread:$0]  %s1602, 256, %s1604, [#allocation4], 128, 128, 8
    $region69: #{tpu_custom_call.1} parent=1 // pred_fallthru
      _
    // Predicated region
    $region70: #{tpu_custom_call.1} parent=1 // pred_check
      _
    $region71: #{tpu_custom_call.1} parent=1 // pred_check_branch
      %1611 = sbr.rel (0) target = $region73
    $region72: #{tpu_custom_call.1} parent=1 // pred_region
      %1613 = dma.done [#allocation4], 256
    $region73: #{tpu_custom_call.1} parent=1 // pred_fallthru
      _
    %1614 = vsyncpa [#allocation3], 1
    %1615 = vsyncpa [#allocation6], 1
    %1616 = vsyncpa [#allocation9], 1
    %1617 = vsyncpa [#allocation4], 1

</llo_original>
